<compile_context>
chip_gen: v6e
topology: v6e:2x2x1
jax: 0.10.0
libtpu: 0.0.40
codegen_flags: <defaults>
</compile_context>

<pallas_src>
import functools

import jax
import jax.numpy as jnp
from jax.experimental import pallas as pl
from jax.experimental.pallas import tpu as pltpu

LANE = 128
SUBLANE = 8


def _round_up(v, m):
    return (v + m - 1) // m * m


def _cnn_kernel(x_ref,
                w1a_ref, s1a_ref, b1a_ref,
                w1b_ref, s1b_ref, b1b_ref,
                w2a_ref, s2a_ref, b2a_ref,
                w2b_ref, s2b_ref, b2b_ref,
                fcw_ref, fcb_ref,
                out_ref,
                buf_c, buf_f,
                *, seq_len, frame):
    N = out_ref.shape[0]                  # rows per grid step = block_b * frame

    # True on real sequence rows (positions 1..seq_len inside each per-batch
    # frame), False on zero-pad rows.  Applied with jnp.where after every layer
    # so pad rows are forced to exactly 0.0: this (a) makes the shifted matmuls
    # equal to Conv1d(padding=1), (b) prevents cross-batch leakage in the row
    # slab, and (c) means the two never-initialized scratch border rows (0 and
    # N+1) can only feed rows that are forced to zero, so they never need
    # zeroing (and NaN/Inf garbage there cannot propagate).
    pos = jax.lax.broadcasted_iota(jnp.int32, (N, 1), 0) % frame
    interior = jnp.logical_and(pos >= 1, pos <= seq_len)

    def conv_bn_relu(buf, w_ref, s_ref, b_ref):
        bv = buf[...]                                     # (N + 2, Cin) bf16
        # Conv1d(k=3, pad=1) == three row-shifted matmuls; bf16 MXU operands
        # come straight from the bf16 scratch (no casts), f32 accumulation.
        y = jnp.dot(bv[0:N, :], w_ref[0], preferred_element_type=jnp.float32)
        y = y + jnp.dot(bv[1:N + 1, :], w_ref[1],
                        preferred_element_type=jnp.float32)
        y = y + jnp.dot(bv[2:N + 2, :], w_ref[2],
                        preferred_element_type=jnp.float32)
        # folded eval-mode BatchNorm + ReLU in f32, then force pad rows to 0.
        y = jnp.maximum(y * s_ref[...] + b_ref[...], 0.0)
        return jnp.where(interior, y, 0.0)

    x = x_ref[...]                                        # (N, Cp) bf16, pads 0

    # conv1 block: conv->BN->ReLU->conv->BN->ReLU, + x residual
    buf_c[1:N + 1, :] = x
    h = conv_bn_relu(buf_c, w1a_ref, s1a_ref, b1a_ref)
    buf_c[1:N + 1, :] = h.astype(jnp.bfloat16)
    h = conv_bn_relu(buf_c, w1b_ref, s1b_ref, b1b_ref)
    buf_c[1:N + 1, :] = (h + x.astype(jnp.float32)).astype(jnp.bfloat16)

    # conv2 block: conv->BN->ReLU->conv->BN->ReLU   (C -> F -> F)
    h = conv_bn_relu(buf_c, w2a_ref, s2a_ref, b2a_ref)
    buf_f[1:N + 1, :] = h.astype(jnp.bfloat16)
    h = conv_bn_relu(buf_f, w2b_ref, s2b_ref, b2b_ref)

    # dropout(p=0.2) is inference-mode identity; final Linear on the MXU.
    # TODO(synk): training-mode dropout / batch-statistics BatchNorm are not
    # implemented (eval-mode semantics only).
    out = jnp.dot(h.astype(jnp.bfloat16), fcw_ref[...],
                  preferred_element_type=jnp.float32) + fcb_ref[...]
    out_ref[...] = out.astype(out_ref.dtype)


def _choose_blocking(batch, frame, target_rows=512):
    """Pick (block_b, grid_steps).

    block_b frames (~target_rows rows) are processed per grid step; the batch
    is zero-padded up to block_b * grid_steps frames.  grid_steps is forced to
    be EVEN whenever it is >= 2 so that with a "parallel" batch axis v7x's two
    TensorCores get equal work; when everything fits in a single step (small
    batch) we keep one big block, which is the best shape for single-TC
    v5e/v6e.  block_b is rebalanced after rounding the step count so batch
    padding stays below one step's worth of frames.
    """
    bb = max(1, min(batch, target_rows // frame))
    steps = -(-batch // bb)
    if steps >= 2:
        if steps % 2 == 1:
            steps += 1
        bb = -(-batch // steps)
    return bb, steps


def _prepare_params(params):
    """One-time (outside jit) prep: zero-pad channel dims to multiples of 128
    (lane-dense, tile-aligned MXU K/N) and cast matmul weights to bf16;
    folded-BN scale/bias and the fc bias stay f32."""
    C = params["w1a"].shape[1]
    F = params["w2a"].shape[2]
    O = params["fcw"].shape[1]
    Cp, Fp, Op = (_round_up(d, LANE) for d in (C, F, O))

    def pad_w(w, cin_p, cout_p):
        _, cin, cout = w.shape
        w = jnp.pad(w, ((0, 0), (0, cin_p - cin), (0, cout_p - cout)))
        return w.astype(jnp.bfloat16)

    def pad_v(v, cout_p):
        return jnp.pad(v, ((0, 0), (0, cout_p - v.shape[-1])))

    return {
        "w1a": pad_w(params["w1a"], Cp, Cp),
        "s1a": pad_v(params["s1a"], Cp), "b1a": pad_v(params["b1a"], Cp),
        "w1b": pad_w(params["w1b"], Cp, Cp),
        "s1b": pad_v(params["s1b"], Cp), "b1b": pad_v(params["b1b"], Cp),
        "w2a": pad_w(params["w2a"], Cp, Fp),
        "s2a": pad_v(params["s2a"], Fp), "b2a": pad_v(params["b2a"], Fp),
        "w2b": pad_w(params["w2b"], Fp, Fp),
        "s2b": pad_v(params["s2b"], Fp), "b2b": pad_v(params["b2b"], Fp),
        "fcw": jnp.pad(params["fcw"],
                       ((0, Fp - F), (0, Op - O))).astype(jnp.bfloat16),
        "fcb": pad_v(params["fcb"], Op),
    }


@functools.partial(jax.jit, static_argnames=("out_dim",))
def cnn_forward(x, pp, *, out_dim):
    B, L, C = x.shape
    out_dtype = x.dtype
    Cp = pp["w1a"].shape[1]
    Fp = pp["w2b"].shape[1]
    Op = pp["fcw"].shape[1]

    frame = _round_up(L + 2, SUBLANE)       # per-batch rows incl. zero pad rows
    bb, steps = _choose_blocking(B, frame)  # frames per grid step, grid length
    N = bb * frame                          # matmul rows per grid step
    B_pad = bb * steps

    # (B, L, C) -> bf16, zero-pad batch / seq (1 front, frame-L-1 back) /
    # channels, then flatten to a 2-D row slab so channels sit on lanes.
    x_slab = jnp.pad(x.astype(jnp.bfloat16),
                     ((0, B_pad - B), (1, frame - L - 1), (0, Cp - C)))
    x_slab = x_slab.reshape(B_pad * frame, Cp)

    def full(shape):
        n = len(shape)
        return pl.BlockSpec(shape, lambda i, _n=n: (0,) * _n)

    in_specs = [
        pl.BlockSpec((N, Cp), lambda i: (i, 0)),          # activation row slab
        full((3, Cp, Cp)), full((1, Cp)), full((1, Cp)),  # conv1a + folded BN
        full((3, Cp, Cp)), full((1, Cp)), full((1, Cp)),  # conv1b + folded BN
        full((3, Cp, Fp)), full((1, Fp)), full((1, Fp)),  # conv2a + folded BN
        full((3, Fp, Fp)), full((1, Fp)), full((1, Fp)),  # conv2b + folded BN
        full((Fp, Op)), full((1, Op)),                    # fc
    ]
    out_specs = pl.BlockSpec((N, Op), lambda i: (i, 0))

    out_slab = pl.pallas_call(
        functools.partial(_cnn_kernel, seq_len=L, frame=frame),
        out_shape=jax.ShapeDtypeStruct((B_pad * frame, Op), out_dtype),
        grid_spec=pltpu.PrefetchScalarGridSpec(
            num_scalar_prefetch=0,
            grid=(steps,),
            in_specs=in_specs,
            out_specs=out_specs,
            scratch_shapes=[pltpu.VMEM((N + 2, Cp), jnp.bfloat16),
                            pltpu.VMEM((N + 2, Fp), jnp.bfloat16)],
        ),
        compiler_params=pltpu.CompilerParams(
            dimension_semantics=("parallel",),
            vmem_limit_bytes=48 * 1024 * 1024,
        ),
    )(x_slab,
      pp["w1a"], pp["s1a"], pp["b1a"],
      pp["w1b"], pp["s1b"], pp["b1b"],
      pp["w2a"], pp["s2a"], pp["b2a"],
      pp["w2b"], pp["s2b"], pp["b2b"],
      pp["fcw"], pp["fcb"])

    # drop the batch padding, the pad rows and the pad channels
    return out_slab.reshape(B_pad, frame, Op)[:B, 1:L + 1, :out_dim]


def init_params(key, C, F, O, eps=1e-5):
    keys = iter(jax.random.split(key, 32))

    def conv_w(cin, cout, k=3):
        bound = 1.0 / jnp.sqrt(cin * k)
        w = jax.random.uniform(next(keys), (k, cin, cout), jnp.float32, -bound, bound)
        b = jax.random.uniform(next(keys), (cout,), jnp.float32, -bound, bound)
        return w, b

    def bn_params(cout):
        gamma = jax.random.uniform(next(keys), (cout,), jnp.float32, 0.5, 1.5)
        beta = 0.1 * jax.random.normal(next(keys), (cout,), jnp.float32)
        mean = 0.1 * jax.random.normal(next(keys), (cout,), jnp.float32)
        var = jax.random.uniform(next(keys), (cout,), jnp.float32, 0.5, 1.5)
        return gamma, beta, mean, var

    params = {}
    for name, cin, cout in [("1a", C, C), ("1b", C, C), ("2a", C, F), ("2b", F, F)]:
        w, cb = conv_w(cin, cout)
        gamma, beta, mean, var = bn_params(cout)
        scale = gamma / jnp.sqrt(var + eps)        # eval-mode BN folded to affine
        bias = beta + (cb - mean) * scale
        params["w" + name] = w
        params["s" + name] = scale.reshape(1, -1)
        params["b" + name] = bias.reshape(1, -1)

    bound = 1.0 / jnp.sqrt(F)
    params["fcw"] = jax.random.uniform(next(keys), (F, O), jnp.float32, -bound, bound)
    params["fcb"] = jax.random.uniform(next(keys), (O,), jnp.float32, -bound, bound).reshape(1, -1)
    return params


def forward_ref(x, params):
    # pure-JAX f32 reference, same math, channels-last
    def layer(h, w, s, b):
        L = h.shape[1]
        hp = jnp.pad(h, ((0, 0), (1, 1), (0, 0)))
        y = sum(jnp.einsum('blc,co->blo', hp[:, k:k + L, :], w[k],
                           preferred_element_type=jnp.float32) for k in range(3))
        return jnp.maximum(y * s + b, 0.0)

    h = layer(x, params["w1a"], params["s1a"], params["b1a"])
    h = layer(h, params["w1b"], params["s1b"], params["b1b"])
    out1 = h + x
    h = layer(out1, params["w2a"], params["s2a"], params["b2a"])
    h = layer(h, params["w2b"], params["s2b"], params["b2b"])
    return jnp.einsum('blf,fo->blo', h, params["fcw"],
                      preferred_element_type=jnp.float32) + params["fcb"]


if __name__ == "__main__":
    B, L = 2, 16
    emb_dim, n_filters, output_dim = 32, 64, 64   # small test sizes (defaults 400)
    key = jax.random.PRNGKey(0)
    kx, kp = jax.random.split(key)
    x = jax.random.normal(kx, (B, L, emb_dim), jnp.float32)
    params = init_params(kp, emb_dim, n_filters, output_dim)

    # padding + bf16 weight cast happens ONCE, outside the jitted forward
    prepared = _prepare_params(params)

    out = jax.block_until_ready(cnn_forward(x, prepared, out_dim=output_dim))
    ref = forward_ref(x, params)

    assert out.shape == (B, L, output_dim)
    assert bool(jnp.all(jnp.isfinite(out)))
    max_err = float(jnp.max(jnp.abs(out - ref)))
    assert bool(jnp.allclose(out, ref, atol=3e-2, rtol=3e-2)), f"max abs err {max_err}"
    print("KERNEL_OK")
</pallas_src>

<mosaic_0001>
module attributes {stable_mosaic.version = 11 : i64} {
  func.func @_cnn_kernel(%arg0: i32, %arg1: memref<48x128xbf16, #tpu.memory_space<vmem>>, %arg2: memref<3x128x128xbf16, #tpu.memory_space<vmem>>, %arg3: memref<1x128xf32, #tpu.memory_space<vmem>>, %arg4: memref<1x128xf32, #tpu.memory_space<vmem>>, %arg5: memref<3x128x128xbf16, #tpu.memory_space<vmem>>, %arg6: memref<1x128xf32, #tpu.memory_space<vmem>>, %arg7: memref<1x128xf32, #tpu.memory_space<vmem>>, %arg8: memref<3x128x128xbf16, #tpu.memory_space<vmem>>, %arg9: memref<1x128xf32, #tpu.memory_space<vmem>>, %arg10: memref<1x128xf32, #tpu.memory_space<vmem>>, %arg11: memref<3x128x128xbf16, #tpu.memory_space<vmem>>, %arg12: memref<1x128xf32, #tpu.memory_space<vmem>>, %arg13: memref<1x128xf32, #tpu.memory_space<vmem>>, %arg14: memref<128x128xbf16, #tpu.memory_space<vmem>>, %arg15: memref<1x128xf32, #tpu.memory_space<vmem>>, %arg16: memref<48x128xf32, #tpu.memory_space<vmem>>, %arg17: memref<50x128xbf16, #tpu.memory_space<vmem>>, %arg18: memref<50x128xbf16, #tpu.memory_space<vmem>>) attributes {dimension_semantics = [#tpu.dimension_semantics<parallel>], iteration_bounds = array<i64: 1>, scalar_prefetch = 0 : i64, scratch_operands = 2 : i64, tpu.core_type = #tpu.core_type<tc>, window_params = [{transform_indices = @transform_0, window_bounds = array<i64: 48, 128>}, {pipeline_mode = #tpu.pipeline_mode<synchronous>, transform_indices = @transform_1, window_bounds = array<i64: 3, 128, 128>}, {pipeline_mode = #tpu.pipeline_mode<synchronous>, transform_indices = @transform_2, window_bounds = array<i64: 1, 128>}, {pipeline_mode = #tpu.pipeline_mode<synchronous>, transform_indices = @transform_3, window_bounds = array<i64: 1, 128>}, {pipeline_mode = #tpu.pipeline_mode<synchronous>, transform_indices = @transform_4, window_bounds = array<i64: 3, 128, 128>}, {pipeline_mode = #tpu.pipeline_mode<synchronous>, transform_indices = @transform_5, window_bounds = array<i64: 1, 128>}, {pipeline_mode = #tpu.pipeline_mode<synchronous>, transform_indices = @transform_6, window_bounds = array<i64: 1, 128>}, {pipeline_mode = #tpu.pipeline_mode<synchronous>, transform_indices = @transform_7, window_bounds = array<i64: 3, 128, 128>}, {pipeline_mode = #tpu.pipeline_mode<synchronous>, transform_indices = @transform_8, window_bounds = array<i64: 1, 128>}, {pipeline_mode = #tpu.pipeline_mode<synchronous>, transform_indices = @transform_9, window_bounds = array<i64: 1, 128>}, {pipeline_mode = #tpu.pipeline_mode<synchronous>, transform_indices = @transform_10, window_bounds = array<i64: 3, 128, 128>}, {pipeline_mode = #tpu.pipeline_mode<synchronous>, transform_indices = @transform_11, window_bounds = array<i64: 1, 128>}, {pipeline_mode = #tpu.pipeline_mode<synchronous>, transform_indices = @transform_12, window_bounds = array<i64: 1, 128>}, {pipeline_mode = #tpu.pipeline_mode<synchronous>, transform_indices = @transform_13, window_bounds = array<i64: 128, 128>}, {pipeline_mode = #tpu.pipeline_mode<synchronous>, transform_indices = @transform_14, window_bounds = array<i64: 1, 128>}, {transform_indices = @transform_15, window_bounds = array<i64: 48, 128>}]} {
    %0 = tpu.iota {dimensions = array<i32: 0>} : vector<48x1xi32>
    %c24_i32 = arith.constant 24 : i32
    %c0_i32 = arith.constant 0 : i32
    %1 = arith.cmpi eq, %c24_i32, %c0_i32 : i32
    %c1_i32 = arith.constant 1 : i32
    %2 = arith.select %1, %c1_i32, %c24_i32 : i32
    %3 = vector.broadcast %2 : i32 to vector<48x1xi32>
    %4 = arith.remsi %0, %3 : vector<48x1xi32>
    %c0_i32_0 = arith.constant 0 : i32
    %5 = vector.broadcast %c0_i32_0 : i32 to vector<48x1xi32>
    %6 = arith.cmpi ne, %4, %5 : vector<48x1xi32>
    %c0_i32_1 = arith.constant 0 : i32
    %7 = vector.broadcast %c0_i32_1 : i32 to vector<48x1xi32>
    %8 = arith.cmpi slt, %4, %7 : vector<48x1xi32>
    %c0_i32_2 = arith.constant 0 : i32
    %9 = arith.cmpi slt, %2, %c0_i32_2 : i32
    %10 = vector.broadcast %9 : i1 to vector<48x1xi1>
    %11 = vector.broadcast %10 : vector<48x1xi1> to vector<48x1xi1>
    %12 = arith.xori %8, %11 : vector<48x1xi1>
    %13 = arith.andi %12, %6 : vector<48x1xi1>
    %14 = vector.broadcast %2 : i32 to vector<48x1xi32>
    %15 = arith.addi %4, %14 : vector<48x1xi32>
    %16 = arith.select %13, %15, %4 : vector<48x1xi1>, vector<48x1xi32>
    %c1_i32_3 = arith.constant 1 : i32
    %17 = vector.broadcast %c1_i32_3 : i32 to vector<48x1xi32>
    %18 = arith.cmpi sge, %16, %17 : vector<48x1xi32>
    %c16_i32 = arith.constant 16 : i32
    %19 = vector.broadcast %c16_i32 : i32 to vector<48x1xi32>
    %20 = arith.cmpi sle, %16, %19 : vector<48x1xi32>
    %21 = arith.andi %18, %20 : vector<48x1xi1>
    %c0 = arith.constant 0 : index
    %c0_4 = arith.constant 0 : index
    %22 = vector.load %arg1[%c0, %c0_4] : memref<48x128xbf16, #tpu.memory_space<vmem>>, vector<48x128xbf16>
    %c1 = arith.constant 1 : index
    %c0_5 = arith.constant 0 : index
    %23 = vector.load %arg17[%c1, %c0_5] : memref<50x128xbf16, #tpu.memory_space<vmem>>, vector<48x128xbf16>
    tpu.vector_store %arg17[%c1, %c0_5], %22 {strides = array<i32>} : memref<50x128xbf16, #tpu.memory_space<vmem>>, vector<48x128xbf16>,
    %c0_6 = arith.constant 0 : index
    %c0_7 = arith.constant 0 : index
    %24 = vector.load %arg17[%c0_6, %c0_7] : memref<50x128xbf16, #tpu.memory_space<vmem>>, vector<50x128xbf16>
    %25 = vector.extract_strided_slice %24 {offsets = [0, 0], sizes = [48, 128], strides = [1, 1]} : vector<50x128xbf16> to vector<48x128xbf16>
    %c0_8 = arith.constant 0 : index
    %c0_9 = arith.constant 0 : index
    %c0_10 = arith.constant 0 : index
    %26 = vector.load %arg2[%c0_8, %c0_9, %c0_10] : memref<3x128x128xbf16, #tpu.memory_space<vmem>>, vector<1x128x128xbf16>
    %27 = vector.shape_cast %26 : vector<1x128x128xbf16> to vector<128x128xbf16>
    %cst = arith.constant dense<0.000000e+00> : vector<48x128xf32>
    %28 = tpu.matmul %25, %27, %cst {dimension_numbers = #tpu.dot_dimension_numbers<[1], [0], [0], [1], [0, 0, 1, 1], [], []>} : vector<48x128xbf16>, vector<128x128xbf16>, vector<48x128xf32> -> vector<48x128xf32>
    %29 = vector.extract_strided_slice %24 {offsets = [1, 0], sizes = [48, 128], strides = [1, 1]} : vector<50x128xbf16> to vector<48x128xbf16>
    %c1_11 = arith.constant 1 : index
    %c0_12 = arith.constant 0 : index
    %c0_13 = arith.constant 0 : index
    %30 = vector.load %arg2[%c1_11, %c0_12, %c0_13] : memref<3x128x128xbf16, #tpu.memory_space<vmem>>, vector<1x128x128xbf16>
    %31 = vector.shape_cast %30 : vector<1x128x128xbf16> to vector<128x128xbf16>
    %cst_14 = arith.constant dense<0.000000e+00> : vector<48x128xf32>
    %32 = tpu.matmul %29, %31, %cst_14 {dimension_numbers = #tpu.dot_dimension_numbers<[1], [0], [0], [1], [0, 0, 1, 1], [], []>} : vector<48x128xbf16>, vector<128x128xbf16>, vector<48x128xf32> -> vector<48x128xf32>
    %33 = arith.addf %28, %32 : vector<48x128xf32>
    %34 = vector.extract_strided_slice %24 {offsets = [2, 0], sizes = [48, 128], strides = [1, 1]} : vector<50x128xbf16> to vector<48x128xbf16>
    %c2 = arith.constant 2 : index
    %c0_15 = arith.constant 0 : index
    %c0_16 = arith.constant 0 : index
    %35 = vector.load %arg2[%c2, %c0_15, %c0_16] : memref<3x128x128xbf16, #tpu.memory_space<vmem>>, vector<1x128x128xbf16>
    %36 = vector.shape_cast %35 : vector<1x128x128xbf16> to vector<128x128xbf16>
    %cst_17 = arith.constant dense<0.000000e+00> : vector<48x128xf32>
    %37 = tpu.matmul %34, %36, %cst_17 {dimension_numbers = #tpu.dot_dimension_numbers<[1], [0], [0], [1], [0, 0, 1, 1], [], []>} : vector<48x128xbf16>, vector<128x128xbf16>, vector<48x128xf32> -> vector<48x128xf32>
    %38 = arith.addf %33, %37 : vector<48x128xf32>
    %c0_18 = arith.constant 0 : index
    %c0_19 = arith.constant 0 : index
    %39 = vector.load %arg3[%c0_18, %c0_19] : memref<1x128xf32, #tpu.memory_space<vmem>>, vector<1x128xf32>
    %40 = vector.broadcast %39 : vector<1x128xf32> to vector<48x128xf32>
    %41 = arith.mulf %38, %40 : vector<48x128xf32>
    %c0_20 = arith.constant 0 : index
    %c0_21 = arith.constant 0 : index
    %42 = vector.load %arg4[%c0_20, %c0_21] : memref<1x128xf32, #tpu.memory_space<vmem>>, vector<1x128xf32>
    %43 = vector.broadcast %42 : vector<1x128xf32> to vector<48x128xf32>
    %44 = arith.addf %41, %43 : vector<48x128xf32>
    %cst_22 = arith.constant 0.000000e+00 : f32
    %45 = vector.broadcast %cst_22 : f32 to vector<48x128xf32>
    %46 = arith.maximumf %44, %45 : vector<48x128xf32>
    %cst_23 = arith.constant 0.000000e+00 : f32
    %47 = vector.shape_cast %21 : vector<48x1xi1> to vector<48x1xi1>
    %48 = vector.broadcast %47 : vector<48x1xi1> to vector<48x128xi1>
    %49 = vector.broadcast %cst_23 : f32 to vector<48x128xf32>
    %50 = arith.select %48, %46, %49 : vector<48x128xi1>, vector<48x128xf32>
    %51 = arith.truncf %50 : vector<48x128xf32> to vector<48x128xbf16>
    %c1_24 = arith.constant 1 : index
    %c0_25 = arith.constant 0 : index
    %52 = vector.load %arg17[%c1_24, %c0_25] : memref<50x128xbf16, #tpu.memory_space<vmem>>, vector<48x128xbf16>
    tpu.vector_store %arg17[%c1_24, %c0_25], %51 {strides = array<i32>} : memref<50x128xbf16, #tpu.memory_space<vmem>>, vector<48x128xbf16>,
    %c0_26 = arith.constant 0 : index
    %c0_27 = arith.constant 0 : index
    %53 = vector.load %arg17[%c0_26, %c0_27] : memref<50x128xbf16, #tpu.memory_space<vmem>>, vector<50x128xbf16>
    %54 = vector.extract_strided_slice %53 {offsets = [0, 0], sizes = [48, 128], strides = [1, 1]} : vector<50x128xbf16> to vector<48x128xbf16>
    %c0_28 = arith.constant 0 : index
    %c0_29 = arith.constant 0 : index
    %c0_30 = arith.constant 0 : index
    %55 = vector.load %arg5[%c0_28, %c0_29, %c0_30] : memref<3x128x128xbf16, #tpu.memory_space<vmem>>, vector<1x128x128xbf16>
    %56 = vector.shape_cast %55 : vector<1x128x128xbf16> to vector<128x128xbf16>
    %cst_31 = arith.constant dense<0.000000e+00> : vector<48x128xf32>
    %57 = tpu.matmul %54, %56, %cst_31 {dimension_numbers = #tpu.dot_dimension_numbers<[1], [0], [0], [1], [0, 0, 1, 1], [], []>} : vector<48x128xbf16>, vector<128x128xbf16>, vector<48x128xf32> -> vector<48x128xf32>
    %58 = vector.extract_strided_slice %53 {offsets = [1, 0], sizes = [48, 128], strides = [1, 1]} : vector<50x128xbf16> to vector<48x128xbf16>
    %c1_32 = arith.constant 1 : index
    %c0_33 = arith.constant 0 : index
    %c0_34 = arith.constant 0 : index
    %59 = vector.load %arg5[%c1_32, %c0_33, %c0_34] : memref<3x128x128xbf16, #tpu.memory_space<vmem>>, vector<1x128x128xbf16>
    %60 = vector.shape_cast %59 : vector<1x128x128xbf16> to vector<128x128xbf16>
    %cst_35 = arith.constant dense<0.000000e+00> : vector<48x128xf32>
    %61 = tpu.matmul %58, %60, %cst_35 {dimension_numbers = #tpu.dot_dimension_numbers<[1], [0], [0], [1], [0, 0, 1, 1], [], []>} : vector<48x128xbf16>, vector<128x128xbf16>, vector<48x128xf32> -> vector<48x128xf32>
    %62 = arith.addf %57, %61 : vector<48x128xf32>
    %63 = vector.extract_strided_slice %53 {offsets = [2, 0], sizes = [48, 128], strides = [1, 1]} : vector<50x128xbf16> to vector<48x128xbf16>
    %c2_36 = arith.constant 2 : index
    %c0_37 = arith.constant 0 : index
    %c0_38 = arith.constant 0 : index
    %64 = vector.load %arg5[%c2_36, %c0_37, %c0_38] : memref<3x128x128xbf16, #tpu.memory_space<vmem>>, vector<1x128x128xbf16>
    %65 = vector.shape_cast %64 : vector<1x128x128xbf16> to vector<128x128xbf16>
    %cst_39 = arith.constant dense<0.000000e+00> : vector<48x128xf32>
    %66 = tpu.matmul %63, %65, %cst_39 {dimension_numbers = #tpu.dot_dimension_numbers<[1], [0], [0], [1], [0, 0, 1, 1], [], []>} : vector<48x128xbf16>, vector<128x128xbf16>, vector<48x128xf32> -> vector<48x128xf32>
    %67 = arith.addf %62, %66 : vector<48x128xf32>
    %c0_40 = arith.constant 0 : index
    %c0_41 = arith.constant 0 : index
    %68 = vector.load %arg6[%c0_40, %c0_41] : memref<1x128xf32, #tpu.memory_space<vmem>>, vector<1x128xf32>
    %69 = vector.broadcast %68 : vector<1x128xf32> to vector<48x128xf32>
    %70 = arith.mulf %67, %69 : vector<48x128xf32>
    %c0_42 = arith.constant 0 : index
    %c0_43 = arith.constant 0 : index
    %71 = vector.load %arg7[%c0_42, %c0_43] : memref<1x128xf32, #tpu.memory_space<vmem>>, vector<1x128xf32>
    %72 = vector.broadcast %71 : vector<1x128xf32> to vector<48x128xf32>
    %73 = arith.addf %70, %72 : vector<48x128xf32>
    %cst_44 = arith.constant 0.000000e+00 : f32
    %74 = vector.broadcast %cst_44 : f32 to vector<48x128xf32>
    %75 = arith.maximumf %73, %74 : vector<48x128xf32>
    %cst_45 = arith.constant 0.000000e+00 : f32
    %76 = vector.shape_cast %21 : vector<48x1xi1> to vector<48x1xi1>
    %77 = vector.broadcast %76 : vector<48x1xi1> to vector<48x128xi1>
    %78 = vector.broadcast %cst_45 : f32 to vector<48x128xf32>
    %79 = arith.select %77, %75, %78 : vector<48x128xi1>, vector<48x128xf32>
    %80 = arith.extf %22 : vector<48x128xbf16> to vector<48x128xf32>
    %81 = arith.addf %79, %80 : vector<48x128xf32>
    %82 = arith.truncf %81 : vector<48x128xf32> to vector<48x128xbf16>
    %c1_46 = arith.constant 1 : index
    %c0_47 = arith.constant 0 : index
    %83 = vector.load %arg17[%c1_46, %c0_47] : memref<50x128xbf16, #tpu.memory_space<vmem>>, vector<48x128xbf16>
    tpu.vector_store %arg17[%c1_46, %c0_47], %82 {strides = array<i32>} : memref<50x128xbf16, #tpu.memory_space<vmem>>, vector<48x128xbf16>,
    %c0_48 = arith.constant 0 : index
    %c0_49 = arith.constant 0 : index
    %84 = vector.load %arg17[%c0_48, %c0_49] : memref<50x128xbf16, #tpu.memory_space<vmem>>, vector<50x128xbf16>
    %85 = vector.extract_strided_slice %84 {offsets = [0, 0], sizes = [48, 128], strides = [1, 1]} : vector<50x128xbf16> to vector<48x128xbf16>
    %c0_50 = arith.constant 0 : index
    %c0_51 = arith.constant 0 : index
    %c0_52 = arith.constant 0 : index
    %86 = vector.load %arg8[%c0_50, %c0_51, %c0_52] : memref<3x128x128xbf16, #tpu.memory_space<vmem>>, vector<1x128x128xbf16>
    %87 = vector.shape_cast %86 : vector<1x128x128xbf16> to vector<128x128xbf16>
    %cst_53 = arith.constant dense<0.000000e+00> : vector<48x128xf32>
    %88 = tpu.matmul %85, %87, %cst_53 {dimension_numbers = #tpu.dot_dimension_numbers<[1], [0], [0], [1], [0, 0, 1, 1], [], []>} : vector<48x128xbf16>, vector<128x128xbf16>, vector<48x128xf32> -> vector<48x128xf32>
    %89 = vector.extract_strided_slice %84 {offsets = [1, 0], sizes = [48, 128], strides = [1, 1]} : vector<50x128xbf16> to vector<48x128xbf16>
    %c1_54 = arith.constant 1 : index
    %c0_55 = arith.constant 0 : index
    %c0_56 = arith.constant 0 : index
    %90 = vector.load %arg8[%c1_54, %c0_55, %c0_56] : memref<3x128x128xbf16, #tpu.memory_space<vmem>>, vector<1x128x128xbf16>
    %91 = vector.shape_cast %90 : vector<1x128x128xbf16> to vector<128x128xbf16>
    %cst_57 = arith.constant dense<0.000000e+00> : vector<48x128xf32>
    %92 = tpu.matmul %89, %91, %cst_57 {dimension_numbers = #tpu.dot_dimension_numbers<[1], [0], [0], [1], [0, 0, 1, 1], [], []>} : vector<48x128xbf16>, vector<128x128xbf16>, vector<48x128xf32> -> vector<48x128xf32>
    %93 = arith.addf %88, %92 : vector<48x128xf32>
    %94 = vector.extract_strided_slice %84 {offsets = [2, 0], sizes = [48, 128], strides = [1, 1]} : vector<50x128xbf16> to vector<48x128xbf16>
    %c2_58 = arith.constant 2 : index
    %c0_59 = arith.constant 0 : index
    %c0_60 = arith.constant 0 : index
    %95 = vector.load %arg8[%c2_58, %c0_59, %c0_60] : memref<3x128x128xbf16, #tpu.memory_space<vmem>>, vector<1x128x128xbf16>
    %96 = vector.shape_cast %95 : vector<1x128x128xbf16> to vector<128x128xbf16>
    %cst_61 = arith.constant dense<0.000000e+00> : vector<48x128xf32>
    %97 = tpu.matmul %94, %96, %cst_61 {dimension_numbers = #tpu.dot_dimension_numbers<[1], [0], [0], [1], [0, 0, 1, 1], [], []>} : vector<48x128xbf16>, vector<128x128xbf16>, vector<48x128xf32> -> vector<48x128xf32>
    %98 = arith.addf %93, %97 : vector<48x128xf32>
    %c0_62 = arith.constant 0 : index
    %c0_63 = arith.constant 0 : index
    %99 = vector.load %arg9[%c0_62, %c0_63] : memref<1x128xf32, #tpu.memory_space<vmem>>, vector<1x128xf32>
    %100 = vector.broadcast %99 : vector<1x128xf32> to vector<48x128xf32>
    %101 = arith.mulf %98, %100 : vector<48x128xf32>
    %c0_64 = arith.constant 0 : index
    %c0_65 = arith.constant 0 : index
    %102 = vector.load %arg10[%c0_64, %c0_65] : memref<1x128xf32, #tpu.memory_space<vmem>>, vector<1x128xf32>
    %103 = vector.broadcast %102 : vector<1x128xf32> to vector<48x128xf32>
    %104 = arith.addf %101, %103 : vector<48x128xf32>
    %cst_66 = arith.constant 0.000000e+00 : f32
    %105 = vector.broadcast %cst_66 : f32 to vector<48x128xf32>
    %106 = arith.maximumf %104, %105 : vector<48x128xf32>
    %cst_67 = arith.constant 0.000000e+00 : f32
    %107 = vector.shape_cast %21 : vector<48x1xi1> to vector<48x1xi1>
    %108 = vector.broadcast %107 : vector<48x1xi1> to vector<48x128xi1>
    %109 = vector.broadcast %cst_67 : f32 to vector<48x128xf32>
    %110 = arith.select %108, %106, %109 : vector<48x128xi1>, vector<48x128xf32>
    %111 = arith.truncf %110 : vector<48x128xf32> to vector<48x128xbf16>
    %c1_68 = arith.constant 1 : index
    %c0_69 = arith.constant 0 : index
    %112 = vector.load %arg18[%c1_68, %c0_69] : memref<50x128xbf16, #tpu.memory_space<vmem>>, vector<48x128xbf16>
    tpu.vector_store %arg18[%c1_68, %c0_69], %111 {strides = array<i32>} : memref<50x128xbf16, #tpu.memory_space<vmem>>, vector<48x128xbf16>,
    %c0_70 = arith.constant 0 : index
    %c0_71 = arith.constant 0 : index
    %113 = vector.load %arg18[%c0_70, %c0_71] : memref<50x128xbf16, #tpu.memory_space<vmem>>, vector<50x128xbf16>
    %114 = vector.extract_strided_slice %113 {offsets = [0, 0], sizes = [48, 128], strides = [1, 1]} : vector<50x128xbf16> to vector<48x128xbf16>
    %c0_72 = arith.constant 0 : index
    %c0_73 = arith.constant 0 : index
    %c0_74 = arith.constant 0 : index
    %115 = vector.load %arg11[%c0_72, %c0_73, %c0_74] : memref<3x128x128xbf16, #tpu.memory_space<vmem>>, vector<1x128x128xbf16>
    %116 = vector.shape_cast %115 : vector<1x128x128xbf16> to vector<128x128xbf16>
    %cst_75 = arith.constant dense<0.000000e+00> : vector<48x128xf32>
    %117 = tpu.matmul %114, %116, %cst_75 {dimension_numbers = #tpu.dot_dimension_numbers<[1], [0], [0], [1], [0, 0, 1, 1], [], []>} : vector<48x128xbf16>, vector<128x128xbf16>, vector<48x128xf32> -> vector<48x128xf32>
    %118 = vector.extract_strided_slice %113 {offsets = [1, 0], sizes = [48, 128], strides = [1, 1]} : vector<50x128xbf16> to vector<48x128xbf16>
    %c1_76 = arith.constant 1 : index
    %c0_77 = arith.constant 0 : index
    %c0_78 = arith.constant 0 : index
    %119 = vector.load %arg11[%c1_76, %c0_77, %c0_78] : memref<3x128x128xbf16, #tpu.memory_space<vmem>>, vector<1x128x128xbf16>
    %120 = vector.shape_cast %119 : vector<1x128x128xbf16> to vector<128x128xbf16>
    %cst_79 = arith.constant dense<0.000000e+00> : vector<48x128xf32>
    %121 = tpu.matmul %118, %120, %cst_79 {dimension_numbers = #tpu.dot_dimension_numbers<[1], [0], [0], [1], [0, 0, 1, 1], [], []>} : vector<48x128xbf16>, vector<128x128xbf16>, vector<48x128xf32> -> vector<48x128xf32>
    %122 = arith.addf %117, %121 : vector<48x128xf32>
    %123 = vector.extract_strided_slice %113 {offsets = [2, 0], sizes = [48, 128], strides = [1, 1]} : vector<50x128xbf16> to vector<48x128xbf16>
    %c2_80 = arith.constant 2 : index
    %c0_81 = arith.constant 0 : index
    %c0_82 = arith.constant 0 : index
    %124 = vector.load %arg11[%c2_80, %c0_81, %c0_82] : memref<3x128x128xbf16, #tpu.memory_space<vmem>>, vector<1x128x128xbf16>
    %125 = vector.shape_cast %124 : vector<1x128x128xbf16> to vector<128x128xbf16>
    %cst_83 = arith.constant dense<0.000000e+00> : vector<48x128xf32>
    %126 = tpu.matmul %123, %125, %cst_83 {dimension_numbers = #tpu.dot_dimension_numbers<[1], [0], [0], [1], [0, 0, 1, 1], [], []>} : vector<48x128xbf16>, vector<128x128xbf16>, vector<48x128xf32> -> vector<48x128xf32>
    %127 = arith.addf %122, %126 : vector<48x128xf32>
    %c0_84 = arith.constant 0 : index
    %c0_85 = arith.constant 0 : index
    %128 = vector.load %arg12[%c0_84, %c0_85] : memref<1x128xf32, #tpu.memory_space<vmem>>, vector<1x128xf32>
    %129 = vector.broadcast %128 : vector<1x128xf32> to vector<48x128xf32>
    %130 = arith.mulf %127, %129 : vector<48x128xf32>
    %c0_86 = arith.constant 0 : index
    %c0_87 = arith.constant 0 : index
    %131 = vector.load %arg13[%c0_86, %c0_87] : memref<1x128xf32, #tpu.memory_space<vmem>>, vector<1x128xf32>
    %132 = vector.broadcast %131 : vector<1x128xf32> to vector<48x128xf32>
    %133 = arith.addf %130, %132 : vector<48x128xf32>
    %cst_88 = arith.constant 0.000000e+00 : f32
    %134 = vector.broadcast %cst_88 : f32 to vector<48x128xf32>
    %135 = arith.maximumf %133, %134 : vector<48x128xf32>
    %cst_89 = arith.constant 0.000000e+00 : f32
    %136 = vector.shape_cast %21 : vector<48x1xi1> to vector<48x1xi1>
    %137 = vector.broadcast %136 : vector<48x1xi1> to vector<48x128xi1>
    %138 = vector.broadcast %cst_89 : f32 to vector<48x128xf32>
    %139 = arith.select %137, %135, %138 : vector<48x128xi1>, vector<48x128xf32>
    %140 = arith.truncf %139 : vector<48x128xf32> to vector<48x128xbf16>
    %c0_90 = arith.constant 0 : index
    %c0_91 = arith.constant 0 : index
    %141 = vector.load %arg14[%c0_90, %c0_91] : memref<128x128xbf16, #tpu.memory_space<vmem>>, vector<128x128xbf16>
    %cst_92 = arith.constant dense<0.000000e+00> : vector<48x128xf32>
    %142 = tpu.matmul %140, %141, %cst_92 {dimension_numbers = #tpu.dot_dimension_numbers<[1], [0], [0], [1], [0, 0, 1, 1], [], []>} : vector<48x128xbf16>, vector<128x128xbf16>, vector<48x128xf32> -> vector<48x128xf32>
    %c0_93 = arith.constant 0 : index
    %c0_94 = arith.constant 0 : index
    %143 = vector.load %arg15[%c0_93, %c0_94] : memref<1x128xf32, #tpu.memory_space<vmem>>, vector<1x128xf32>
    %144 = vector.broadcast %143 : vector<1x128xf32> to vector<48x128xf32>
    %145 = arith.addf %142, %144 : vector<48x128xf32>
    %c0_95 = arith.constant 0 : index
    %c0_96 = arith.constant 0 : index
    %146 = vector.load %arg16[%c0_95, %c0_96] : memref<48x128xf32, #tpu.memory_space<vmem>>, vector<48x128xf32>
    tpu.vector_store %arg16[%c0_95, %c0_96], %145 {strides = array<i32>} : memref<48x128xf32, #tpu.memory_space<vmem>>, vector<48x128xf32>,
    return
  }
  func.func @transform_0(%arg0: i32) -> (i32, i32) {
    %c0_i32 = arith.constant 0 : i32
    %c0_i32_0 = arith.constant 0 : i32
    return %arg0, %c0_i32 : i32, i32
  }
  func.func @transform_1(%arg0: i32) -> (i32, i32, i32) {
    %c0_i32 = arith.constant 0 : i32
    %c0_i32_0 = arith.constant 0 : i32
    %c0_i32_1 = arith.constant 0 : i32
    %c0_i32_2 = arith.constant 0 : i32
    return %c0_i32, %c0_i32_0, %c0_i32_1 : i32, i32, i32
  }
  func.func @transform_2(%arg0: i32) -> (i32, i32) {
    %c0_i32 = arith.constant 0 : i32
    %c0_i32_0 = arith.constant 0 : i32
    %c0_i32_1 = arith.constant 0 : i32
    return %c0_i32, %c0_i32_0 : i32, i32
  }
  func.func @transform_3(%arg0: i32) -> (i32, i32) {
    %c0_i32 = arith.constant 0 : i32
    %c0_i32_0 = arith.constant 0 : i32
    %c0_i32_1 = arith.constant 0 : i32
    return %c0_i32, %c0_i32_0 : i32, i32
  }
  func.func @transform_4(%arg0: i32) -> (i32, i32, i32) {
    %c0_i32 = arith.constant 0 : i32
    %c0_i32_0 = arith.constant 0 : i32
    %c0_i32_1 = arith.constant 0 : i32
    %c0_i32_2 = arith.constant 0 : i32
    return %c0_i32, %c0_i32_0, %c0_i32_1 : i32, i32, i32
  }
  func.func @transform_5(%arg0: i32) -> (i32, i32) {
    %c0_i32 = arith.constant 0 : i32
    %c0_i32_0 = arith.constant 0 : i32
    %c0_i32_1 = arith.constant 0 : i32
    return %c0_i32, %c0_i32_0 : i32, i32
  }
  func.func @transform_6(%arg0: i32) -> (i32, i32) {
    %c0_i32 = arith.constant 0 : i32
    %c0_i32_0 = arith.constant 0 : i32
    %c0_i32_1 = arith.constant 0 : i32
    return %c0_i32, %c0_i32_0 : i32, i32
  }
  func.func @transform_7(%arg0: i32) -> (i32, i32, i32) {
    %c0_i32 = arith.constant 0 : i32
    %c0_i32_0 = arith.constant 0 : i32
    %c0_i32_1 = arith.constant 0 : i32
    %c0_i32_2 = arith.constant 0 : i32
    return %c0_i32, %c0_i32_0, %c0_i32_1 : i32, i32, i32
  }
  func.func @transform_8(%arg0: i32) -> (i32, i32) {
    %c0_i32 = arith.constant 0 : i32
    %c0_i32_0 = arith.constant 0 : i32
    %c0_i32_1 = arith.constant 0 : i32
    return %c0_i32, %c0_i32_0 : i32, i32
  }
  func.func @transform_9(%arg0: i32) -> (i32, i32) {
    %c0_i32 = arith.constant 0 : i32
    %c0_i32_0 = arith.constant 0 : i32
    %c0_i32_1 = arith.constant 0 : i32
    return %c0_i32, %c0_i32_0 : i32, i32
  }
  func.func @transform_10(%arg0: i32) -> (i32, i32, i32) {
    %c0_i32 = arith.constant 0 : i32
    %c0_i32_0 = arith.constant 0 : i32
    %c0_i32_1 = arith.constant 0 : i32
    %c0_i32_2 = arith.constant 0 : i32
    return %c0_i32, %c0_i32_0, %c0_i32_1 : i32, i32, i32
  }
  func.func @transform_11(%arg0: i32) -> (i32, i32) {
    %c0_i32 = arith.constant 0 : i32
    %c0_i32_0 = arith.constant 0 : i32
    %c0_i32_1 = arith.constant 0 : i32
    return %c0_i32, %c0_i32_0 : i32, i32
  }
  func.func @transform_12(%arg0: i32) -> (i32, i32) {
    %c0_i32 = arith.constant 0 : i32
    %c0_i32_0 = arith.constant 0 : i32
    %c0_i32_1 = arith.constant 0 : i32
    return %c0_i32, %c0_i32_0 : i32, i32
  }
  func.func @transform_13(%arg0: i32) -> (i32, i32) {
    %c0_i32 = arith.constant 0 : i32
    %c0_i32_0 = arith.constant 0 : i32
    %c0_i32_1 = arith.constant 0 : i32
    return %c0_i32, %c0_i32_0 : i32, i32
  }
  func.func @transform_14(%arg0: i32) -> (i32, i32) {
    %c0_i32 = arith.constant 0 : i32
    %c0_i32_0 = arith.constant 0 : i32
    %c0_i32_1 = arith.constant 0 : i32
    return %c0_i32, %c0_i32_0 : i32, i32
  }
  func.func @transform_15(%arg0: i32) -> (i32, i32) {
    %c0_i32 = arith.constant 0 : i32
    %c0_i32_0 = arith.constant 0 : i32
    return %arg0, %c0_i32 : i32, i32
  }
}

</mosaic_0001>

<llo_original>
// kernel: cnn_forward.1
$region0: #{cnn_forward.1}
  #allocation0 [shape = 'u32[]', space=smem, size = 0x4, offset = 0x4, fixed_abs, tag = 'smem constant byte address 0x4 - core index']
  #allocation1 [shape = 'u32[144,128]{1,0:T(1,128)}', space=vmem, size = 0x12000, scoped, tag = 'internal scratch']
  #allocation2 [shape = 'bf16[50,128]{1,0:T(8,128)(2,1)}', space=vmem, size = 0x3800, scoped, tag = 'scratch operand']
  #allocation3 [shape = 'bf16[50,128]{1,0:T(8,128)(2,1)}', space=vmem, size = 0x3800, scoped, tag = 'scratch operand']
  %s0 = inlined_call_operand.vmem [shape: bf16[48,128], index: 0, kind: input, shape index: {}]
  %s1 = inlined_call_operand.hbm [shape: bf16[3,128,128], index: 1, kind: input, shape index: {}]
  %s2 = inlined_call_operand.vmem [shape: f32[1,128], index: 2, kind: input, shape index: {}]
  %s3 = inlined_call_operand.vmem [shape: f32[1,128], index: 3, kind: input, shape index: {}]
  %s4 = inlined_call_operand.hbm [shape: bf16[3,128,128], index: 4, kind: input, shape index: {}]
  %s5 = inlined_call_operand.vmem [shape: f32[1,128], index: 5, kind: input, shape index: {}]
  %s6 = inlined_call_operand.vmem [shape: f32[1,128], index: 6, kind: input, shape index: {}]
  %s7 = inlined_call_operand.hbm [shape: bf16[3,128,128], index: 7, kind: input, shape index: {}]
  %s8 = inlined_call_operand.vmem [shape: f32[1,128], index: 8, kind: input, shape index: {}]
  %s9 = inlined_call_operand.vmem [shape: f32[1,128], index: 9, kind: input, shape index: {}]
  %s10 = inlined_call_operand.hbm [shape: bf16[3,128,128], index: 10, kind: input, shape index: {}]
  %s11 = inlined_call_operand.vmem [shape: f32[1,128], index: 11, kind: input, shape index: {}]
  %s12 = inlined_call_operand.vmem [shape: f32[1,128], index: 12, kind: input, shape index: {}]
  %s13 = inlined_call_operand.vmem [shape: bf16[128,128], index: 13, kind: input, shape index: {}]
  %s14 = inlined_call_operand.vmem [shape: f32[1,128], index: 14, kind: input, shape index: {}]
  %s15 = inlined_call_operand.vmem [shape: f32[48,128], index: 15, kind: output, shape index: {}]
  %s16 = sld [smem:[#allocation0]]
  $region86: #{cnn_forward.1} parent=0
    _
  %s18 = ssub.s32 1, %s16
  %s19 = scalar_select 0, %s18, %s16
  $region1: #{cnn_forward.1} parent=0
    #allocation4 [shape = 'u8[98304]{0}', space=vmem, size = 0x18000, scoped, tag = 'input window, operand 1, single buffered']
    #allocation5 [shape = 's32[1]{0}', space=sflag, size = 0x4, scoped, tag = 'scoped memory for cnn_forward.1']
    #allocation6 [shape = 'u8[98304]{0}', space=vmem, size = 0x18000, scoped, tag = 'input window, operand 4, single buffered']
    #allocation7 [shape = 's32[1]{0}', space=sflag, size = 0x4, scoped, tag = 'scoped memory for cnn_forward.1']
    #allocation8 [shape = 'u8[98304]{0}', space=vmem, size = 0x18000, scoped, tag = 'input window, operand 7, single buffered']
    #allocation9 [shape = 'u8[98304]{0}', space=vmem, size = 0x18000, scoped, tag = 'input window, operand 10, single buffered']
    #allocation10 [shape = 's32[1]{0}', space=sflag, size = 0x4, scoped, tag = 'scoped memory for cnn_forward.1']
    %20 = vsyncpa [#allocation5], 0
    %21 = vsyncpa [#allocation7], 0
    %22 = vsyncpa [#allocation10], 0
    // Predicated region
    $region2: #{cnn_forward.1} parent=1 // pred_check
      _
    $region3: #{cnn_forward.1} parent=1 // pred_check_branch
      %24 = sbr.rel (0) target = $region5
    $region4: #{cnn_forward.1} parent=1 // pred_region
      _
    $region5: #{cnn_forward.1} parent=1 // pred_fallthru
      _
    // Predicated region
    $region6: #{cnn_forward.1} parent=1 // pred_check
      _
    $region7: #{cnn_forward.1} parent=1 // pred_check_branch
      %26 = sbr.rel (0) target = $region9
    $region8: #{cnn_forward.1} parent=1 // pred_region
      %s28 = ssub.s32 3072, 3072
      %29 = vsyncadd [#allocation5], %s28
      %s30 = sshll.u32 [#allocation4], 4
      %s31 = int_to_ptr.vmem [resolvable:$true] %s30
      %36 = dma.hbm_to_vmem [thread:$0]  %s1, 3072, %s31, [#allocation5], 64, 64, 4
    $region9: #{cnn_forward.1} parent=1 // pred_fallthru
      _
    // Predicated region
    $region10: #{cnn_forward.1} parent=1 // pred_check
      _
    $region11: #{cnn_forward.1} parent=1 // pred_check_branch
      %38 = sbr.rel (0) target = $region13
    $region12: #{cnn_forward.1} parent=1 // pred_region
      _
    $region13: #{cnn_forward.1} parent=1 // pred_fallthru
      _
    // Predicated region
    $region14: #{cnn_forward.1} parent=1 // pred_check
      _
    $region15: #{cnn_forward.1} parent=1 // pred_check_branch
      %40 = sbr.rel (0) target = $region17
    $region16: #{cnn_forward.1} parent=1 // pred_region
      _
    $region17: #{cnn_forward.1} parent=1 // pred_fallthru
      _
    // Predicated region
    $region18: #{cnn_forward.1} parent=1 // pred_check
      _
    $region19: #{cnn_forward.1} parent=1 // pred_check_branch
      %42 = sbr.rel (0) target = $region21
    $region20: #{cnn_forward.1} parent=1 // pred_region
      %s44 = ssub.s32 3072, 3072
      %45 = vsyncadd [#allocation7], %s44
      %s46 = sshll.u32 [#allocation6], 4
      %s47 = int_to_ptr.vmem [resolvable:$true] %s46
      %52 = dma.hbm_to_vmem [thread:$0]  %s4, 3072, %s47, [#allocation7], 64, 64, 4
    $region21: #{cnn_forward.1} parent=1 // pred_fallthru
      _
    // Predicated region
    $region22: #{cnn_forward.1} parent=1 // pred_check
      _
    $region23: #{cnn_forward.1} parent=1 // pred_check_branch
      %54 = sbr.rel (0) target = $region25
    $region24: #{cnn_forward.1} parent=1 // pred_region
      _
    $region25: #{cnn_forward.1} parent=1 // pred_fallthru
      _
    // Predicated region
    $region26: #{cnn_forward.1} parent=1 // pred_check
      _
    $region27: #{cnn_forward.1} parent=1 // pred_check_branch
      %56 = sbr.rel (0) target = $region29
    $region28: #{cnn_forward.1} parent=1 // pred_region
      _
    $region29: #{cnn_forward.1} parent=1 // pred_fallthru
      _
    // Predicated region
    $region30: #{cnn_forward.1} parent=1 // pred_check
      _
    $region31: #{cnn_forward.1} parent=1 // pred_check_branch
      %58 = sbr.rel (0) target = $region33
    $region32: #{cnn_forward.1} parent=1 // pred_region
      %s60 = ssub.s32 3072, 3072
      %61 = vsyncadd [#allocation7], %s60
      %s62 = sshll.u32 [#allocation8], 4
      %s63 = int_to_ptr.vmem [resolvable:$true] %s62
      %68 = dma.hbm_to_vmem [thread:$0]  %s7, 3072, %s63, [#allocation7], 64, 64, 4
    $region33: #{cnn_forward.1} parent=1 // pred_fallthru
      _
    // Predicated region
    $region34: #{cnn_forward.1} parent=1 // pred_check
      _
    $region35: #{cnn_forward.1} parent=1 // pred_check_branch
      %70 = sbr.rel (0) target = $region37
    $region36: #{cnn_forward.1} parent=1 // pred_region
      _
    $region37: #{cnn_forward.1} parent=1 // pred_fallthru
      _
    // Predicated region
    $region38: #{cnn_forward.1} parent=1 // pred_check
      _
    $region39: #{cnn_forward.1} parent=1 // pred_check_branch
      %72 = sbr.rel (0) target = $region41
    $region40: #{cnn_forward.1} parent=1 // pred_region
      _
    $region41: #{cnn_forward.1} parent=1 // pred_fallthru
      _
    // Predicated region
    $region42: #{cnn_forward.1} parent=1 // pred_check
      _
    $region43: #{cnn_forward.1} parent=1 // pred_check_branch
      %74 = sbr.rel (0) target = $region45
    $region44: #{cnn_forward.1} parent=1 // pred_region
      %s76 = ssub.s32 3072, 3072
      %77 = vsyncadd [#allocation10], %s76
      %s78 = sshll.u32 [#allocation9], 4
      %s79 = int_to_ptr.vmem [resolvable:$true] %s78
      %84 = dma.hbm_to_vmem [thread:$0]  %s10, 3072, %s79, [#allocation10], 64, 64, 4
    $region45: #{cnn_forward.1} parent=1 // pred_fallthru
      _
    // Predicated region
    $region46: #{cnn_forward.1} parent=1 // pred_check
      _
    $region47: #{cnn_forward.1} parent=1 // pred_check_branch
      %86 = sbr.rel (0) target = $region49
    $region48: #{cnn_forward.1} parent=1 // pred_region
      _
    $region49: #{cnn_forward.1} parent=1 // pred_fallthru
      _
    // Predicated region
    $region50: #{cnn_forward.1} parent=1 // pred_check
      _
    $region51: #{cnn_forward.1} parent=1 // pred_check_branch
      %88 = sbr.rel (0) target = $region53
    $region52: #{cnn_forward.1} parent=1 // pred_region
      _
    $region53: #{cnn_forward.1} parent=1 // pred_fallthru
      _
    // Predicated region
    $region54: #{cnn_forward.1} parent=1 // pred_check
      _
    $region55: #{cnn_forward.1} parent=1 // pred_check_branch
      %90 = sbr.rel (0) target = $region57
    $region56: #{cnn_forward.1} parent=1 // pred_region
      _
    $region57: #{cnn_forward.1} parent=1 // pred_fallthru
      _
    // Predicated region
    $region58: #{cnn_forward.1} parent=1 // pred_check
      _
    $region59: #{cnn_forward.1} parent=1 // pred_check_branch
      %92 = sbr.rel (0) target = $region61
    $region60: #{cnn_forward.1} parent=1 // pred_region
      _
    $region61: #{cnn_forward.1} parent=1 // pred_fallthru
      _
    // Predicated region
    $region62: #{cnn_forward.1} parent=1 // pred_check
      _
    $region63: #{cnn_forward.1} parent=1 // pred_check_branch
      %94 = sbr.rel (0) target = $region65
    $region64: #{cnn_forward.1} parent=1 // pred_region
      %95 = dma.done [#allocation5], 3072
    $region65: #{cnn_forward.1} parent=1 // pred_fallthru
      _
    // Predicated region
    $region66: #{cnn_forward.1} parent=1 // pred_check
      _
    $region67: #{cnn_forward.1} parent=1 // pred_check_branch
      %97 = sbr.rel (0) target = $region69
    $region68: #{cnn_forward.1} parent=1 // pred_region
      %98 = dma.done [#allocation7], 3072
    $region69: #{cnn_forward.1} parent=1 // pred_fallthru
      _
    // Predicated region
    $region70: #{cnn_forward.1} parent=1 // pred_check
      _
    $region71: #{cnn_forward.1} parent=1 // pred_check_branch
      %100 = sbr.rel (0) target = $region73
    $region72: #{cnn_forward.1} parent=1 // pred_region
      %101 = dma.done [#allocation7], 3072
    $region73: #{cnn_forward.1} parent=1 // pred_fallthru
      _
    // Predicated region
    $region74: #{cnn_forward.1} parent=1 // pred_check
      _
    $region75: #{cnn_forward.1} parent=1 // pred_check_branch
      %103 = sbr.rel (0) target = $region77
    $region76: #{cnn_forward.1} parent=1 // pred_region
      %104 = dma.done [#allocation10], 3072
    $region77: #{cnn_forward.1} parent=1 // pred_fallthru
      _
    %v106 = vlaneseq
    %v107 = vshrl.u32 %v106, 7
    %v108 = vadd.s32 %v107, 8
    %v109 = vadd.s32 %v107, 16
    %v110 = vadd.s32 %v107, 24
    %v111 = vadd.s32 %v107, 32
    %v112 = vadd.s32 %v107, 40
    %vm113 = vcmp.lt.s32.totalorder %v107, 0
    %v114 = vsub.s32 0, %v107
    %v115 = vsel %vm113, %v114, %v107
    %v116 = vmul.u32.u64.compose %v115, 2863311531
    %v117 = vextract.low.u32 %v116
    %v118 = vextract.high.u32 %v116
    %v119 = vshrl.u32 %v118, 4
    %v120 = vmul.u32 %v119, 24
    %v121 = vsub.s32 %v115, %v120
    %v122 = vsub.s32 0, %v121
    %v123 = vsel %vm113, %v122, %v121
    %vm124 = vcmp.lt.s32.totalorder %v108, 0
    %v125 = vsub.s32 0, %v108
    %v126 = vsel %vm124, %v125, %v108
    %v127 = vmul.u32.u64.compose %v126, 2863311531
    %v128 = vextract.low.u32 %v127
    %v129 = vextract.high.u32 %v127
    %v130 = vshrl.u32 %v129, 4
    %v131 = vmul.u32 %v130, 24
    %v132 = vsub.s32 %v126, %v131
    %v133 = vsub.s32 0, %v132
    %v134 = vsel %vm124, %v133, %v132
    %vm135 = vcmp.lt.s32.totalorder %v109, 0
    %v136 = vsub.s32 0, %v109
    %v137 = vsel %vm135, %v136, %v109
    %v138 = vmul.u32.u64.compose %v137, 2863311531
    %v139 = vextract.low.u32 %v138
    %v140 = vextract.high.u32 %v138
    %v141 = vshrl.u32 %v140, 4
    %v142 = vmul.u32 %v141, 24
    %v143 = vsub.s32 %v137, %v142
    %v144 = vsub.s32 0, %v143
    %v145 = vsel %vm135, %v144, %v143
    %vm146 = vcmp.lt.s32.totalorder %v110, 0
    %v147 = vsub.s32 0, %v110
    %v148 = vsel %vm146, %v147, %v110
    %v149 = vmul.u32.u64.compose %v148, 2863311531
    %v150 = vextract.low.u32 %v149
    %v151 = vextract.high.u32 %v149
    %v152 = vshrl.u32 %v151, 4
    %v153 = vmul.u32 %v152, 24
    %v154 = vsub.s32 %v148, %v153
    %v155 = vsub.s32 0, %v154
    %v156 = vsel %vm146, %v155, %v154
    %vm157 = vcmp.lt.s32.totalorder %v111, 0
    %v158 = vsub.s32 0, %v111
    %v159 = vsel %vm157, %v158, %v111
    %v160 = vmul.u32.u64.compose %v159, 2863311531
    %v161 = vextract.low.u32 %v160
    %v162 = vextract.high.u32 %v160
    %v163 = vshrl.u32 %v162, 4
    %v164 = vmul.u32 %v163, 24
    %v165 = vsub.s32 %v159, %v164
    %v166 = vsub.s32 0, %v165
    %v167 = vsel %vm157, %v166, %v165
    %vm168 = vcmp.lt.s32.totalorder %v112, 0
    %v169 = vsub.s32 0, %v112
    %v170 = vsel %vm168, %v169, %v112
    %v171 = vmul.u32.u64.compose %v170, 2863311531
    %v172 = vextract.low.u32 %v171
    %v173 = vextract.high.u32 %v171
    %v174 = vshrl.u32 %v173, 4
    %v175 = vmul.u32 %v174, 24
    %v176 = vsub.s32 %v170, %v175
    %v177 = vsub.s32 0, %v176
    %v178 = vsel %vm168, %v177, %v176
    %vm179 = vcmp.ne.s32.totalorder %v123, 0
    %vm180 = vcmp.ne.s32.totalorder %v134, 0
    %vm181 = vcmp.ne.s32.totalorder %v145, 0
    %vm182 = vcmp.ne.s32.totalorder %v156, 0
    %vm183 = vcmp.ne.s32.totalorder %v167, 0
    %vm184 = vcmp.ne.s32.totalorder %v178, 0
    %vm185 = vcmp.lt.s32.totalorder %v123, 0
    %vm186 = vcmp.lt.s32.totalorder %v134, 0
    %vm187 = vcmp.lt.s32.totalorder %v145, 0
    %vm188 = vcmp.lt.s32.totalorder %v156, 0
    %vm189 = vcmp.lt.s32.totalorder %v167, 0
    %vm190 = vcmp.lt.s32.totalorder %v178, 0
    %vm191 = vmand %vm185, %vm179
    %vm192 = vmand %vm186, %vm180
    %vm193 = vmand %vm187, %vm181
    %vm194 = vmand %vm188, %vm182
    %vm195 = vmand %vm189, %vm183
    %vm196 = vmand %vm190, %vm184
    %v197 = vadd.s32 %v123, 24
    %v198 = vadd.s32 %v134, 24
    %v199 = vadd.s32 %v145, 24
    %v200 = vadd.s32 %v156, 24
    %v201 = vadd.s32 %v167, 24
    %v202 = vadd.s32 %v178, 24
    %v203 = vsel %vm191, %v197, %v123
    %v204 = vsel %vm192, %v198, %v134
    %v205 = vsel %vm193, %v199, %v145
    %v206 = vsel %vm194, %v200, %v156
    %v207 = vsel %vm195, %v201, %v167
    %v208 = vsel %vm196, %v202, %v178
    %vm209 = vcmp.ge.s32.totalorder %v203, 1
    %vm210 = vcmp.ge.s32.totalorder %v204, 1
    %vm211 = vcmp.ge.s32.totalorder %v205, 1
    %vm212 = vcmp.ge.s32.totalorder %v206, 1
    %vm213 = vcmp.ge.s32.totalorder %v207, 1
    %vm214 = vcmp.ge.s32.totalorder %v208, 1
    %vm215 = vcmp.le.s32.totalorder %v203, 16
    %vm216 = vcmp.le.s32.totalorder %v204, 16
    %vm217 = vcmp.le.s32.totalorder %v205, 16
    %vm218 = vcmp.le.s32.totalorder %v206, 16
    %vm219 = vcmp.le.s32.totalorder %v207, 16
    %vm220 = vcmp.le.s32.totalorder %v208, 16
    %vm221 = vmand %vm209, %vm215
    %vm222 = vmand %vm210, %vm216
    %vm223 = vmand %vm211, %vm217
    %vm224 = vmand %vm212, %vm218
    %vm225 = vmand %vm213, %vm219
    %vm226 = vmand %vm214, %vm220
    %v227 = vld [vmem:[%s0] sm:$0xf]
    %v228 = vld [vmem:[%s0 + $0x4] sm:$0xf]
    %v229 = vld [vmem:[%s0 + $0x8] sm:$0xf]
    %v230 = vld [vmem:[%s0 + $0xc] sm:$0xf]
    %v231 = vld [vmem:[%s0 + $0x10] sm:$0xf]
    %v232 = vld [vmem:[%s0 + $0x14] sm:$0xf]
    %vm233 = vsmask.f32 256
    %vm234 = vsmask.f32 4368
    %vm235 = vmor %vm233, %vm234
    %v237 = vshrl.u32 %v227, 16
    %v239 = vrot.slane %v237, 7
    %v240 = vshll.u32 %v227, 16
    %v242 = vor.u32 %v239, %v240
    %v243 = vrot.slane %v239, 4
    %v245 = vshrl.u32 %v228, 16
    %v247 = vrot.slane %v245, 7
    %v248 = vshll.u32 %v228, 16
    %v250 = vor.u32 %v247, %v248
    %v251 = vsel %vm235, %v243, %v250
    %v252 = vrot.slane %v247, 4
    %v254 = vshrl.u32 %v229, 16
    %v256 = vrot.slane %v254, 7
    %v257 = vshll.u32 %v229, 16
    %v259 = vor.u32 %v256, %v257
    %v260 = vsel %vm235, %v252, %v259
    %v261 = vrot.slane %v256, 4
    %v263 = vshrl.u32 %v230, 16
    %v265 = vrot.slane %v263, 7
    %v266 = vshll.u32 %v230, 16
    %v268 = vor.u32 %v265, %v266
    %v269 = vsel %vm235, %v261, %v268
    %v270 = vrot.slane %v265, 4
    %v272 = vshrl.u32 %v231, 16
    %v274 = vrot.slane %v272, 7
    %v275 = vshll.u32 %v231, 16
    %v277 = vor.u32 %v274, %v275
    %v278 = vsel %vm235, %v270, %v277
    %v279 = vrot.slane %v274, 4
    %v281 = vshrl.u32 %v232, 16
    %v283 = vrot.slane %v281, 7
    %v284 = vshll.u32 %v232, 16
    %v286 = vor.u32 %v283, %v284
    %v287 = vsel %vm235, %v279, %v286
    %v288 = vrot.slane %v283, 4
    %vm296 = vcmask 1043456
    %vm297 = vsmask.f32 7938
    %vm298 = vmand %vm296, %vm297
    %v299 = vld [vmem:[#allocation2] sm:$0xf]
    %v300 = vsel %vm298, %v242, %v299
    %301 = vst [vmem:[#allocation2] sm:$0xf] %v300
    %302 = vst [vmem:[#allocation2 + $0x4] sm:$0xf] %v251
    %303 = vst [vmem:[#allocation2 + $0x8] sm:$0xf] %v260
    %304 = vst [vmem:[#allocation2 + $0xc] sm:$0xf] %v269
    %305 = vst [vmem:[#allocation2 + $0x10] sm:$0xf] %v278
    %306 = vst [vmem:[#allocation2 + $0x14] sm:$0xf] %v287
    %vm307 = vcmask 1040384
    %vm308 = vmand %vm307, %vm233
    %v309 = vld [vmem:[#allocation2 + $0x18] sm:$0x1]
    %v310 = vsel %vm308, %v288, %v309
    %311 = vst [vmem:[#allocation2 + $0x18] sm:$0x1] %v310
    %v312 = vld [vmem:[#allocation2] sm:$0xf]
    %v313 = vld [vmem:[#allocation2 + $0x4] sm:$0xf]
    %v314 = vld [vmem:[#allocation2 + $0x8] sm:$0xf]
    %v315 = vld [vmem:[#allocation2 + $0xc] sm:$0xf]
    %v316 = vld [vmem:[#allocation2 + $0x10] sm:$0xf]
    %v317 = vld [vmem:[#allocation2 + $0x14] sm:$0xf]
    %v318 = vld [vmem:[#allocation2 + $0x18] sm:$0x1]
    %v319 = vld [vmem:[#allocation4] sm:$0xf]
    %v320 = vld [vmem:[#allocation4 + $0x4] sm:$0xf]
    %v321 = vld [vmem:[#allocation4 + $0x8] sm:$0xf]
    %v322 = vld [vmem:[#allocation4 + $0xc] sm:$0xf]
    %v323 = vld [vmem:[#allocation4 + $0x10] sm:$0xf]
    %v324 = vld [vmem:[#allocation4 + $0x14] sm:$0xf]
    %v325 = vld [vmem:[#allocation4 + $0x18] sm:$0xf]
    %v326 = vld [vmem:[#allocation4 + $0x1c] sm:$0xf]
    %v327 = vld [vmem:[#allocation4 + $0x20] sm:$0xf]
    %v328 = vld [vmem:[#allocation4 + $0x24] sm:$0xf]
    %v329 = vld [vmem:[#allocation4 + $0x28] sm:$0xf]
    %v330 = vld [vmem:[#allocation4 + $0x2c] sm:$0xf]
    %v331 = vld [vmem:[#allocation4 + $0x30] sm:$0xf]
    %v332 = vld [vmem:[#allocation4 + $0x34] sm:$0xf]
    %v333 = vld [vmem:[#allocation4 + $0x38] sm:$0xf]
    %v334 = vld [vmem:[#allocation4 + $0x3c] sm:$0xf]
    %s335 = scalar_lea.vmem [#allocation4], 64
    %v336 = vld [vmem:[%s335] sm:$0xf]
    %v337 = vld [vmem:[%s335 + $0x4] sm:$0xf]
    %v338 = vld [vmem:[%s335 + $0x8] sm:$0xf]
    %v339 = vld [vmem:[%s335 + $0xc] sm:$0xf]
    %v340 = vld [vmem:[%s335 + $0x10] sm:$0xf]
    %v341 = vld [vmem:[%s335 + $0x14] sm:$0xf]
    %v342 = vld [vmem:[%s335 + $0x18] sm:$0xf]
    %v343 = vld [vmem:[%s335 + $0x1c] sm:$0xf]
    %v344 = vld [vmem:[%s335 + $0x20] sm:$0xf]
    %v345 = vld [vmem:[%s335 + $0x24] sm:$0xf]
    %v346 = vld [vmem:[%s335 + $0x28] sm:$0xf]
    %v347 = vld [vmem:[%s335 + $0x2c] sm:$0xf]
    %v348 = vld [vmem:[%s335 + $0x30] sm:$0xf]
    %v349 = vld [vmem:[%s335 + $0x34] sm:$0xf]
    %v350 = vld [vmem:[%s335 + $0x38] sm:$0xf]
    %v351 = vld [vmem:[%s335 + $0x3c] sm:$0xf]
    %v359 = vunpack.c.l.b16 %v312
    %v360 = vunpack.c.l.b16 %v313
    %v361 = vunpack.c.l.b16 %v314
    %v362 = vunpack.c.l.b16 %v315
    %v363 = vunpack.c.l.b16 %v316
    %v364 = vunpack.c.l.b16 %v317
    %v365 = vunpack.c.l.b16 %v318
    %v366 = vpack.c.b16 %v360, %v359
    %v367 = vpack.c.b16 %v362, %v361
    %v368 = vpack.c.b16 %v364, %v363
    %v369 = vpack.c.b16 %v365, %v365
    %vm370 = vsmask.f32 7424
    %v372 = vshrl.u32 %v366, 16
    %v374 = vshll.u32 %v366, 16
    %v376 = vrot.slane %v374, 1
    %v377 = vor.u32 %v372, %v376
    %v379 = vshll.u32 %v367, 16
    %v381 = vrot.slane %v379, 1
    %v382 = vsel %vm370, %v377, %v381
    %v383 = vshrl.u32 %v367, 16
    %v385 = vor.u32 %v383, %v381
    %v387 = vshll.u32 %v368, 16
    %v389 = vrot.slane %v387, 1
    %v390 = vsel %vm370, %v385, %v389
    %v391 = vshrl.u32 %v368, 16
    %v393 = vor.u32 %v391, %v389
    %v395 = vshll.u32 %v369, 16
    %v397 = vrot.slane %v395, 1
    %v398 = vsel %vm370, %v393, %v397
    %v418 = vunpack.c.l.b16 %v336
    %v419 = vunpack.c.l.b16 %v337
    %v420 = vunpack.c.l.b16 %v338
    %v421 = vunpack.c.l.b16 %v339
    %v422 = vunpack.c.l.b16 %v340
    %v423 = vunpack.c.l.b16 %v341
    %v424 = vunpack.c.l.b16 %v342
    %v425 = vunpack.c.l.b16 %v343
    %v426 = vunpack.c.l.b16 %v344
    %v427 = vunpack.c.l.b16 %v345
    %v428 = vunpack.c.l.b16 %v346
    %v429 = vunpack.c.l.b16 %v347
    %v430 = vunpack.c.l.b16 %v348
    %v431 = vunpack.c.l.b16 %v349
    %v432 = vunpack.c.l.b16 %v350
    %v433 = vunpack.c.l.b16 %v351
    %v434 = vpack.c.b16 %v419, %v418
    %v435 = vpack.c.b16 %v421, %v420
    %v436 = vpack.c.b16 %v423, %v422
    %v437 = vpack.c.b16 %v425, %v424
    %v438 = vpack.c.b16 %v427, %v426
    %v439 = vpack.c.b16 %v429, %v428
    %v440 = vpack.c.b16 %v431, %v430
    %v441 = vpack.c.b16 %v433, %v432
    %450 = vmatprep.subr.bf16.mxu0 0
    %451 = vmatpush1.bf16.msra.mxu0 %v441
    %452 = vmatprep.subr.bf16.mxu0 0
    %453 = vmatpush1.bf16.msra.mxu0 %v440
    %454 = vmatprep.subr.bf16.mxu0 0
    %455 = vmatpush1.bf16.msra.mxu0 %v439
    %456 = vmatprep.subr.bf16.mxu0 0
    %457 = vmatpush1.bf16.msra.mxu0 %v438
    %458 = vmatprep.subr.bf16.mxu0 0
    %459 = vmatpush1.bf16.msra.mxu0 %v437
    %460 = vmatprep.subr.bf16.mxu0 0
    %461 = vmatpush1.bf16.msra.mxu0 %v436
    %462 = vmatprep.subr.bf16.mxu0 0
    %463 = vmatpush1.bf16.msra.mxu0 %v435
    %464 = vmatprep.subr.bf16.mxu0 0
    %465 = vmatpush1.bf16.msra.mxu0 %v434
    %466 = vmatprep.subr.bf16.mxu0 0
    %467 = vmatpush2.bf16.msra.mxu0 0
    %468 = vmatprep.subr.bf16.mxu0 0
    %469 = vmatpush2.bf16.msra.mxu0 0
    %470 = vmatprep.subr.bf16.mxu0 0
    %471 = vmatpush2.bf16.msra.mxu0 0
    %472 = vmatprep.subr.bf16.mxu0 0
    %473 = vmatpush2.bf16.msra.mxu0 0
    %474 = vmatprep.subr.bf16.mxu0 0
    %475 = vmatpush2.bf16.msra.mxu0 0
    %476 = vmatprep.subr.bf16.mxu0 0
    %477 = vmatpush2.bf16.msra.mxu0 0
    %478 = vmatprep.subr.bf16.mxu0 0
    %479 = vmatpush2.bf16.msra.mxu0 0
    %480 = vmatprep.subr.bf16.mxu0 0
    %481 = vmatpush2.bf16.msra.mxu0 0
    %482 = vmatprep.mubr.bf16.mxu0 0
    %483 = vmatmul.mubr.bf16.gmra.mxu0 %v382
    %v484 = vpop.f32.mrf.mxu0
    %v485 = vadd.f32 0.0, %v484
    %v486 = vpop.f32.mrf.mxu0
    %v487 = vpop.f32.mrf.mxu0
    %v488 = vadd.f32 0.0, %v487
    %v489 = vpop.f32.mrf.mxu0
    %490 = vmatprep.mubr.bf16.mxu0 0
    %491 = vmatmul.mubr.bf16.gmra.mxu0 %v390
    %v492 = vpop.f32.mrf.mxu0
    %v493 = vadd.f32 0.0, %v492
    %v494 = vpop.f32.mrf.mxu0
    %v495 = vpop.f32.mrf.mxu0
    %v496 = vadd.f32 0.0, %v495
    %v497 = vpop.f32.mrf.mxu0
    %498 = vmatprep.mubr.bf16.mxu0 0
    %499 = vmatmul.mubr.bf16.gmra.mxu0 %v398
    %v500 = vpop.f32.mrf.mxu0
    %v501 = vadd.f32 0.0, %v500
    %v502 = vpop.f32.mrf.mxu0
    %v503 = vpop.f32.mrf.mxu0
    %v504 = vadd.f32 0.0, %v503
    %v505 = vpop.f32.mrf.mxu0
    %506 = vdwg.mxu0
    %v526 = vunpack.c.l.b16 %v319
    %v527 = vunpack.c.l.b16 %v320
    %v528 = vunpack.c.l.b16 %v321
    %v529 = vunpack.c.l.b16 %v322
    %v530 = vunpack.c.l.b16 %v323
    %v531 = vunpack.c.l.b16 %v324
    %v532 = vunpack.c.l.b16 %v325
    %v533 = vunpack.c.l.b16 %v326
    %v534 = vunpack.c.l.b16 %v327
    %v535 = vunpack.c.l.b16 %v328
    %v536 = vunpack.c.l.b16 %v329
    %v537 = vunpack.c.l.b16 %v330
    %v538 = vunpack.c.l.b16 %v331
    %v539 = vunpack.c.l.b16 %v332
    %v540 = vunpack.c.l.b16 %v333
    %v541 = vunpack.c.l.b16 %v334
    %v542 = vpack.c.b16 %v527, %v526
    %v543 = vpack.c.b16 %v529, %v528
    %v544 = vpack.c.b16 %v531, %v530
    %v545 = vpack.c.b16 %v533, %v532
    %v546 = vpack.c.b16 %v535, %v534
    %v547 = vpack.c.b16 %v537, %v536
    %v548 = vpack.c.b16 %v539, %v538
    %v549 = vpack.c.b16 %v541, %v540
    %558 = vmatprep.subr.bf16.mxu0 0
    %559 = vmatpush1.bf16.msra.mxu0 %v549
    %560 = vmatprep.subr.bf16.mxu0 0
    %561 = vmatpush1.bf16.msra.mxu0 %v548
    %562 = vmatprep.subr.bf16.mxu0 0
    %563 = vmatpush1.bf16.msra.mxu0 %v547
    %564 = vmatprep.subr.bf16.mxu0 0
    %565 = vmatpush1.bf16.msra.mxu0 %v546
    %566 = vmatprep.subr.bf16.mxu0 0
    %567 = vmatpush1.bf16.msra.mxu0 %v545
    %568 = vmatprep.subr.bf16.mxu0 0
    %569 = vmatpush1.bf16.msra.mxu0 %v544
    %570 = vmatprep.subr.bf16.mxu0 0
    %571 = vmatpush1.bf16.msra.mxu0 %v543
    %572 = vmatprep.subr.bf16.mxu0 0
    %573 = vmatpush1.bf16.msra.mxu0 %v542
    %574 = vmatprep.subr.bf16.mxu0 0
    %575 = vmatpush2.bf16.msra.mxu0 0
    %576 = vmatprep.subr.bf16.mxu0 0
    %577 = vmatpush2.bf16.msra.mxu0 0
    %578 = vmatprep.subr.bf16.mxu0 0
    %579 = vmatpush2.bf16.msra.mxu0 0
    %580 = vmatprep.subr.bf16.mxu0 0
    %581 = vmatpush2.bf16.msra.mxu0 0
    %582 = vmatprep.subr.bf16.mxu0 0
    %583 = vmatpush2.bf16.msra.mxu0 0
    %584 = vmatprep.subr.bf16.mxu0 0
    %585 = vmatpush2.bf16.msra.mxu0 0
    %586 = vmatprep.subr.bf16.mxu0 0
    %587 = vmatpush2.bf16.msra.mxu0 0
    %588 = vmatprep.subr.bf16.mxu0 0
    %589 = vmatpush2.bf16.msra.mxu0 0
    %590 = vmatprep.mubr.bf16.mxu0 0
    %591 = vmatmul.mubr.bf16.gmra.mxu0 %v366
    %v592 = vpop.f32.mrf.mxu0
    %v593 = vadd.f32 %v485, %v592
    %v594 = vpop.f32.mrf.mxu0
    %v595 = vpop.f32.mrf.mxu0
    %v596 = vadd.f32 %v488, %v595
    %v597 = vpop.f32.mrf.mxu0
    %598 = vmatprep.mubr.bf16.mxu0 0
    %599 = vmatmul.mubr.bf16.gmra.mxu0 %v367
    %v600 = vpop.f32.mrf.mxu0
    %v601 = vadd.f32 %v493, %v600
    %v602 = vpop.f32.mrf.mxu0
    %v603 = vpop.f32.mrf.mxu0
    %v604 = vadd.f32 %v496, %v603
    %v605 = vpop.f32.mrf.mxu0
    %606 = vmatprep.mubr.bf16.mxu0 0
    %607 = vmatmul.mubr.bf16.gmra.mxu0 %v368
    %v608 = vpop.f32.mrf.mxu0
    %v609 = vadd.f32 %v501, %v608
    %v610 = vpop.f32.mrf.mxu0
    %v611 = vpop.f32.mrf.mxu0
    %v612 = vadd.f32 %v504, %v611
    %v613 = vpop.f32.mrf.mxu0
    %614 = vdwg.mxu0
    %s615 = scalar_lea.vmem [#allocation4], 128
    %v616 = vld [vmem:[%s615] sm:$0xf]
    %v617 = vld [vmem:[%s615 + $0x4] sm:$0xf]
    %v618 = vld [vmem:[%s615 + $0x8] sm:$0xf]
    %v619 = vld [vmem:[%s615 + $0xc] sm:$0xf]
    %v620 = vld [vmem:[%s615 + $0x10] sm:$0xf]
    %v621 = vld [vmem:[%s615 + $0x14] sm:$0xf]
    %v622 = vld [vmem:[%s615 + $0x18] sm:$0xf]
    %v623 = vld [vmem:[%s615 + $0x1c] sm:$0xf]
    %v624 = vld [vmem:[%s615 + $0x20] sm:$0xf]
    %v625 = vld [vmem:[%s615 + $0x24] sm:$0xf]
    %v626 = vld [vmem:[%s615 + $0x28] sm:$0xf]
    %v627 = vld [vmem:[%s615 + $0x2c] sm:$0xf]
    %v628 = vld [vmem:[%s615 + $0x30] sm:$0xf]
    %v629 = vld [vmem:[%s615 + $0x34] sm:$0xf]
    %v630 = vld [vmem:[%s615 + $0x38] sm:$0xf]
    %v631 = vld [vmem:[%s615 + $0x3c] sm:$0xf]
    %vm632 = vcmask 1046528
    %v633 = vrot.slane %v366, 1
    %v634 = vrot.slane %v367, 1
    %v635 = vsel %vm632, %v633, %v634
    %v636 = vrot.slane %v368, 1
    %v637 = vsel %vm632, %v634, %v636
    %v638 = vrot.slane %v369, 1
    %v639 = vsel %vm632, %v636, %v638
    %v659 = vunpack.c.l.b16 %v616
    %v660 = vunpack.c.l.b16 %v617
    %v661 = vunpack.c.l.b16 %v618
    %v662 = vunpack.c.l.b16 %v619
    %v663 = vunpack.c.l.b16 %v620
    %v664 = vunpack.c.l.b16 %v621
    %v665 = vunpack.c.l.b16 %v622
    %v666 = vunpack.c.l.b16 %v623
    %v667 = vunpack.c.l.b16 %v624
    %v668 = vunpack.c.l.b16 %v625
    %v669 = vunpack.c.l.b16 %v626
    %v670 = vunpack.c.l.b16 %v627
    %v671 = vunpack.c.l.b16 %v628
    %v672 = vunpack.c.l.b16 %v629
    %v673 = vunpack.c.l.b16 %v630
    %v674 = vunpack.c.l.b16 %v631
    %v675 = vpack.c.b16 %v660, %v659
    %v676 = vpack.c.b16 %v662, %v661
    %v677 = vpack.c.b16 %v664, %v663
    %v678 = vpack.c.b16 %v666, %v665
    %v679 = vpack.c.b16 %v668, %v667
    %v680 = vpack.c.b16 %v670, %v669
    %v681 = vpack.c.b16 %v672, %v671
    %v682 = vpack.c.b16 %v674, %v673
    %691 = vmatprep.subr.bf16.mxu0 0
    %692 = vmatpush1.bf16.msra.mxu0 %v682
    %693 = vmatprep.subr.bf16.mxu0 0
    %694 = vmatpush1.bf16.msra.mxu0 %v681
    %695 = vmatprep.subr.bf16.mxu0 0
    %696 = vmatpush1.bf16.msra.mxu0 %v680
    %697 = vmatprep.subr.bf16.mxu0 0
    %698 = vmatpush1.bf16.msra.mxu0 %v679
    %699 = vmatprep.subr.bf16.mxu0 0
    %700 = vmatpush1.bf16.msra.mxu0 %v678
    %701 = vmatprep.subr.bf16.mxu0 0
    %702 = vmatpush1.bf16.msra.mxu0 %v677
    %703 = vmatprep.subr.bf16.mxu0 0
    %704 = vmatpush1.bf16.msra.mxu0 %v676
    %705 = vmatprep.subr.bf16.mxu0 0
    %706 = vmatpush1.bf16.msra.mxu0 %v675
    %707 = vmatprep.subr.bf16.mxu0 0
    %708 = vmatpush2.bf16.msra.mxu0 0
    %709 = vmatprep.subr.bf16.mxu0 0
    %710 = vmatpush2.bf16.msra.mxu0 0
    %711 = vmatprep.subr.bf16.mxu0 0
    %712 = vmatpush2.bf16.msra.mxu0 0
    %713 = vmatprep.subr.bf16.mxu0 0
    %714 = vmatpush2.bf16.msra.mxu0 0
    %715 = vmatprep.subr.bf16.mxu0 0
    %716 = vmatpush2.bf16.msra.mxu0 0
    %717 = vmatprep.subr.bf16.mxu0 0
    %718 = vmatpush2.bf16.msra.mxu0 0
    %719 = vmatprep.subr.bf16.mxu0 0
    %720 = vmatpush2.bf16.msra.mxu0 0
    %721 = vmatprep.subr.bf16.mxu0 0
    %722 = vmatpush2.bf16.msra.mxu0 0
    %723 = vmatprep.mubr.bf16.mxu0 0
    %724 = vmatmul.mubr.bf16.gmra.mxu0 %v635
    %v725 = vpop.f32.mrf.mxu0
    %v726 = vadd.f32 0.0, %v725
    %v727 = vpop.f32.mrf.mxu0
    %v728 = vpop.f32.mrf.mxu0
    %v729 = vadd.f32 0.0, %v728
    %v730 = vpop.f32.mrf.mxu0
    %731 = vmatprep.mubr.bf16.mxu0 0
    %732 = vmatmul.mubr.bf16.gmra.mxu0 %v637
    %v733 = vpop.f32.mrf.mxu0
    %v734 = vadd.f32 0.0, %v733
    %v735 = vpop.f32.mrf.mxu0
    %v736 = vpop.f32.mrf.mxu0
    %v737 = vadd.f32 0.0, %v736
    %v738 = vpop.f32.mrf.mxu0
    %739 = vmatprep.mubr.bf16.mxu0 0
    %740 = vmatmul.mubr.bf16.gmra.mxu0 %v639
    %v741 = vpop.f32.mrf.mxu0
    %v742 = vadd.f32 0.0, %v741
    %v743 = vpop.f32.mrf.mxu0
    %v744 = vpop.f32.mrf.mxu0
    %v745 = vadd.f32 0.0, %v744
    %v746 = vpop.f32.mrf.mxu0
    %747 = vdwg.mxu0
    %v748 = vadd.f32 %v593, %v726
    %v749 = vadd.f32 %v596, %v729
    %v750 = vadd.f32 %v601, %v734
    %v751 = vadd.f32 %v604, %v737
    %v752 = vadd.f32 %v609, %v742
    %v753 = vadd.f32 %v612, %v745
    %v754 = vld [vmem:[%s2] sm:$0x1]
    %v756 = vlaneseq
    %v757 = vshrl.u32 %v756, 7
    %v758 = vsub.s32 0, %v757
    %v759 = vrot.slane %v754, %v758
    %v761 = vmul.f32 %v748, %v759
    %v762 = vmul.f32 %v749, %v759
    %v763 = vmul.f32 %v750, %v759
    %v764 = vmul.f32 %v751, %v759
    %v765 = vmul.f32 %v752, %v759
    %v766 = vmul.f32 %v753, %v759
    %v767 = vld [vmem:[%s3] sm:$0x1]
    %v769 = vlaneseq
    %v770 = vshrl.u32 %v769, 7
    %v771 = vsub.s32 0, %v770
    %v772 = vrot.slane %v767, %v771
    %v774 = vadd.f32 %v761, %v772
    %v775 = vadd.f32 %v762, %v772
    %v776 = vadd.f32 %v763, %v772
    %v777 = vadd.f32 %v764, %v772
    %v778 = vadd.f32 %v765, %v772
    %v779 = vadd.f32 %v766, %v772
    %v780 = vmax.f32 %v774, 0.0
    %v781 = vmax.f32 %v775, 0.0
    %v782 = vmax.f32 %v776, 0.0
    %v783 = vmax.f32 %v777, 0.0
    %v784 = vmax.f32 %v778, 0.0
    %v785 = vmax.f32 %v779, 0.0
    %v786 = vsel %vm221, 1, 0
    %v787 = vsel %vm222, 1, 0
    %v788 = vsel %vm223, 1, 0
    %v789 = vsel %vm224, 1, 0
    %v790 = vsel %vm225, 1, 0
    %v791 = vsel %vm226, 1, 0
    %vm792 = vcmp.eq.s32.totalorder %v786, 1
    %vm793 = vcmp.eq.s32.totalorder %v787, 1
    %vm794 = vcmp.eq.s32.totalorder %v788, 1
    %vm795 = vcmp.eq.s32.totalorder %v789, 1
    %vm796 = vcmp.eq.s32.totalorder %v790, 1
    %vm797 = vcmp.eq.s32.totalorder %v791, 1
    %v798 = vsel %vm792, %v780, 0.0
    %v799 = vsel %vm793, %v781, 0.0
    %v800 = vsel %vm794, %v782, 0.0
    %v801 = vsel %vm795, %v783, 0.0
    %v802 = vsel %vm796, %v784, 0.0
    %v803 = vsel %vm797, %v785, 0.0
    %v804 = vpack.c.bf16 %v799, %v798
    %v805 = vpack.c.bf16 %v801, %v800
    %v806 = vpack.c.bf16 %v803, %v802
    %v810 = vunpack.c.l.b16 %v804
    %v811 = vunpack.c.h.b16 %v804
    %v812 = vunpack.c.l.b16 %v805
    %v813 = vunpack.c.h.b16 %v805
    %v814 = vunpack.c.l.b16 %v806
    %v815 = vunpack.c.h.b16 %v806
    %v816 = vpack.c.b16 %v810, %v810
    %v817 = vpack.c.b16 %v811, %v811
    %v818 = vpack.c.b16 %v812, %v812
    %v819 = vpack.c.b16 %v813, %v813
    %v820 = vpack.c.b16 %v814, %v814
    %v821 = vpack.c.b16 %v815, %v815
    %v823 = vshrl.u32 %v816, 16
    %v825 = vrot.slane %v823, 7
    %v826 = vshll.u32 %v816, 16
    %v828 = vor.u32 %v825, %v826
    %v829 = vrot.slane %v825, 4
    %v831 = vshrl.u32 %v817, 16
    %v833 = vrot.slane %v831, 7
    %v834 = vshll.u32 %v817, 16
    %v836 = vor.u32 %v833, %v834
    %v837 = vsel %vm235, %v829, %v836
    %v838 = vrot.slane %v833, 4
    %v840 = vshrl.u32 %v818, 16
    %v842 = vrot.slane %v840, 7
    %v843 = vshll.u32 %v818, 16
    %v845 = vor.u32 %v842, %v843
    %v846 = vsel %vm235, %v838, %v845
    %v847 = vrot.slane %v842, 4
    %v849 = vshrl.u32 %v819, 16
    %v851 = vrot.slane %v849, 7
    %v852 = vshll.u32 %v819, 16
    %v854 = vor.u32 %v851, %v852
    %v855 = vsel %vm235, %v847, %v854
    %v856 = vrot.slane %v851, 4
    %v858 = vshrl.u32 %v820, 16
    %v860 = vrot.slane %v858, 7
    %v861 = vshll.u32 %v820, 16
    %v863 = vor.u32 %v860, %v861
    %v864 = vsel %vm235, %v856, %v863
    %v865 = vrot.slane %v860, 4
    %v867 = vshrl.u32 %v821, 16
    %v869 = vrot.slane %v867, 7
    %v870 = vshll.u32 %v821, 16
    %v872 = vor.u32 %v869, %v870
    %v873 = vsel %vm235, %v865, %v872
    %v874 = vrot.slane %v869, 4
    %v882 = vsel %vm298, %v828, %v312
    %883 = vst [vmem:[#allocation2] sm:$0xf] %v882
    %884 = vst [vmem:[#allocation2 + $0x4] sm:$0xf] %v837
    %885 = vst [vmem:[#allocation2 + $0x8] sm:$0xf] %v846
    %886 = vst [vmem:[#allocation2 + $0xc] sm:$0xf] %v855
    %887 = vst [vmem:[#allocation2 + $0x10] sm:$0xf] %v864
    %888 = vst [vmem:[#allocation2 + $0x14] sm:$0xf] %v873
    %v889 = vld [vmem:[#allocation2 + $0x18] sm:$0x1]
    %v890 = vsel %vm308, %v874, %v889
    %891 = vst [vmem:[#allocation2 + $0x18] sm:$0x1] %v890
    %v892 = vld [vmem:[#allocation2] sm:$0xf]
    %v893 = vld [vmem:[#allocation2 + $0x4] sm:$0xf]
    %v894 = vld [vmem:[#allocation2 + $0x8] sm:$0xf]
    %v895 = vld [vmem:[#allocation2 + $0xc] sm:$0xf]
    %v896 = vld [vmem:[#allocation2 + $0x10] sm:$0xf]
    %v897 = vld [vmem:[#allocation2 + $0x14] sm:$0xf]
    %v898 = vld [vmem:[#allocation2 + $0x18] sm:$0x1]
    %v899 = vld [vmem:[#allocation6] sm:$0xf]
    %v900 = vld [vmem:[#allocation6 + $0x4] sm:$0xf]
    %v901 = vld [vmem:[#allocation6 + $0x8] sm:$0xf]
    %v902 = vld [vmem:[#allocation6 + $0xc] sm:$0xf]
    %v903 = vld [vmem:[#allocation6 + $0x10] sm:$0xf]
    %v904 = vld [vmem:[#allocation6 + $0x14] sm:$0xf]
    %v905 = vld [vmem:[#allocation6 + $0x18] sm:$0xf]
    %v906 = vld [vmem:[#allocation6 + $0x1c] sm:$0xf]
    %v907 = vld [vmem:[#allocation6 + $0x20] sm:$0xf]
    %v908 = vld [vmem:[#allocation6 + $0x24] sm:$0xf]
    %v909 = vld [vmem:[#allocation6 + $0x28] sm:$0xf]
    %v910 = vld [vmem:[#allocation6 + $0x2c] sm:$0xf]
    %v911 = vld [vmem:[#allocation6 + $0x30] sm:$0xf]
    %v912 = vld [vmem:[#allocation6 + $0x34] sm:$0xf]
    %v913 = vld [vmem:[#allocation6 + $0x38] sm:$0xf]
    %v914 = vld [vmem:[#allocation6 + $0x3c] sm:$0xf]
    %s915 = scalar_lea.vmem [#allocation6], 64
    %v916 = vld [vmem:[%s915] sm:$0xf]
    %v917 = vld [vmem:[%s915 + $0x4] sm:$0xf]
    %v918 = vld [vmem:[%s915 + $0x8] sm:$0xf]
    %v919 = vld [vmem:[%s915 + $0xc] sm:$0xf]
    %v920 = vld [vmem:[%s915 + $0x10] sm:$0xf]
    %v921 = vld [vmem:[%s915 + $0x14] sm:$0xf]
    %v922 = vld [vmem:[%s915 + $0x18] sm:$0xf]
    %v923 = vld [vmem:[%s915 + $0x1c] sm:$0xf]
    %v924 = vld [vmem:[%s915 + $0x20] sm:$0xf]
    %v925 = vld [vmem:[%s915 + $0x24] sm:$0xf]
    %v926 = vld [vmem:[%s915 + $0x28] sm:$0xf]
    %v927 = vld [vmem:[%s915 + $0x2c] sm:$0xf]
    %v928 = vld [vmem:[%s915 + $0x30] sm:$0xf]
    %v929 = vld [vmem:[%s915 + $0x34] sm:$0xf]
    %v930 = vld [vmem:[%s915 + $0x38] sm:$0xf]
    %v931 = vld [vmem:[%s915 + $0x3c] sm:$0xf]
    %v939 = vunpack.c.l.b16 %v892
    %v940 = vunpack.c.l.b16 %v893
    %v941 = vunpack.c.l.b16 %v894
    %v942 = vunpack.c.l.b16 %v895
    %v943 = vunpack.c.l.b16 %v896
    %v944 = vunpack.c.l.b16 %v897
    %v945 = vunpack.c.l.b16 %v898
    %v946 = vpack.c.b16 %v940, %v939
    %v947 = vpack.c.b16 %v942, %v941
    %v948 = vpack.c.b16 %v944, %v943
    %v949 = vpack.c.b16 %v945, %v945
    %v951 = vshrl.u32 %v946, 16
    %v953 = vshll.u32 %v946, 16
    %v955 = vrot.slane %v953, 1
    %v956 = vor.u32 %v951, %v955
    %v958 = vshll.u32 %v947, 16
    %v960 = vrot.slane %v958, 1
    %v961 = vsel %vm370, %v956, %v960
    %v962 = vshrl.u32 %v947, 16
    %v964 = vor.u32 %v962, %v960
    %v966 = vshll.u32 %v948, 16
    %v968 = vrot.slane %v966, 1
    %v969 = vsel %vm370, %v964, %v968
    %v970 = vshrl.u32 %v948, 16
    %v972 = vor.u32 %v970, %v968
    %v974 = vshll.u32 %v949, 16
    %v976 = vrot.slane %v974, 1
    %v977 = vsel %vm370, %v972, %v976
    %v997 = vunpack.c.l.b16 %v916
    %v998 = vunpack.c.l.b16 %v917
    %v999 = vunpack.c.l.b16 %v918
    %v1000 = vunpack.c.l.b16 %v919
    %v1001 = vunpack.c.l.b16 %v920
    %v1002 = vunpack.c.l.b16 %v921
    %v1003 = vunpack.c.l.b16 %v922
    %v1004 = vunpack.c.l.b16 %v923
    %v1005 = vunpack.c.l.b16 %v924
    %v1006 = vunpack.c.l.b16 %v925
    %v1007 = vunpack.c.l.b16 %v926
    %v1008 = vunpack.c.l.b16 %v927
    %v1009 = vunpack.c.l.b16 %v928
    %v1010 = vunpack.c.l.b16 %v929
    %v1011 = vunpack.c.l.b16 %v930
    %v1012 = vunpack.c.l.b16 %v931
    %v1013 = vpack.c.b16 %v998, %v997
    %v1014 = vpack.c.b16 %v1000, %v999
    %v1015 = vpack.c.b16 %v1002, %v1001
    %v1016 = vpack.c.b16 %v1004, %v1003
    %v1017 = vpack.c.b16 %v1006, %v1005
    %v1018 = vpack.c.b16 %v1008, %v1007
    %v1019 = vpack.c.b16 %v1010, %v1009
    %v1020 = vpack.c.b16 %v1012, %v1011
    %1029 = vmatprep.subr.bf16.mxu0 0
    %1030 = vmatpush1.bf16.msra.mxu0 %v1020
    %1031 = vmatprep.subr.bf16.mxu0 0
    %1032 = vmatpush1.bf16.msra.mxu0 %v1019
    %1033 = vmatprep.subr.bf16.mxu0 0
    %1034 = vmatpush1.bf16.msra.mxu0 %v1018
    %1035 = vmatprep.subr.bf16.mxu0 0
    %1036 = vmatpush1.bf16.msra.mxu0 %v1017
    %1037 = vmatprep.subr.bf16.mxu0 0
    %1038 = vmatpush1.bf16.msra.mxu0 %v1016
    %1039 = vmatprep.subr.bf16.mxu0 0
    %1040 = vmatpush1.bf16.msra.mxu0 %v1015
    %1041 = vmatprep.subr.bf16.mxu0 0
    %1042 = vmatpush1.bf16.msra.mxu0 %v1014
    %1043 = vmatprep.subr.bf16.mxu0 0
    %1044 = vmatpush1.bf16.msra.mxu0 %v1013
    %1045 = vmatprep.subr.bf16.mxu0 0
    %1046 = vmatpush2.bf16.msra.mxu0 0
    %1047 = vmatprep.subr.bf16.mxu0 0
    %1048 = vmatpush2.bf16.msra.mxu0 0
    %1049 = vmatprep.subr.bf16.mxu0 0
    %1050 = vmatpush2.bf16.msra.mxu0 0
    %1051 = vmatprep.subr.bf16.mxu0 0
    %1052 = vmatpush2.bf16.msra.mxu0 0
    %1053 = vmatprep.subr.bf16.mxu0 0
    %1054 = vmatpush2.bf16.msra.mxu0 0
    %1055 = vmatprep.subr.bf16.mxu0 0
    %1056 = vmatpush2.bf16.msra.mxu0 0
    %1057 = vmatprep.subr.bf16.mxu0 0
    %1058 = vmatpush2.bf16.msra.mxu0 0
    %1059 = vmatprep.subr.bf16.mxu0 0
    %1060 = vmatpush2.bf16.msra.mxu0 0
    %1061 = vmatprep.mubr.bf16.mxu0 0
    %1062 = vmatmul.mubr.bf16.gmra.mxu0 %v961
    %v1063 = vpop.f32.mrf.mxu0
    %v1064 = vadd.f32 0.0, %v1063
    %v1065 = vpop.f32.mrf.mxu0
    %v1066 = vpop.f32.mrf.mxu0
    %v1067 = vadd.f32 0.0, %v1066
    %v1068 = vpop.f32.mrf.mxu0
    %1069 = vmatprep.mubr.bf16.mxu0 0
    %1070 = vmatmul.mubr.bf16.gmra.mxu0 %v969
    %v1071 = vpop.f32.mrf.mxu0
    %v1072 = vadd.f32 0.0, %v1071
    %v1073 = vpop.f32.mrf.mxu0
    %v1074 = vpop.f32.mrf.mxu0
    %v1075 = vadd.f32 0.0, %v1074
    %v1076 = vpop.f32.mrf.mxu0
    %1077 = vmatprep.mubr.bf16.mxu0 0
    %1078 = vmatmul.mubr.bf16.gmra.mxu0 %v977
    %v1079 = vpop.f32.mrf.mxu0
    %v1080 = vadd.f32 0.0, %v1079
    %v1081 = vpop.f32.mrf.mxu0
    %v1082 = vpop.f32.mrf.mxu0
    %v1083 = vadd.f32 0.0, %v1082
    %v1084 = vpop.f32.mrf.mxu0
    %1085 = vdwg.mxu0
    %v1105 = vunpack.c.l.b16 %v899
    %v1106 = vunpack.c.l.b16 %v900
    %v1107 = vunpack.c.l.b16 %v901
    %v1108 = vunpack.c.l.b16 %v902
    %v1109 = vunpack.c.l.b16 %v903
    %v1110 = vunpack.c.l.b16 %v904
    %v1111 = vunpack.c.l.b16 %v905
    %v1112 = vunpack.c.l.b16 %v906
    %v1113 = vunpack.c.l.b16 %v907
    %v1114 = vunpack.c.l.b16 %v908
    %v1115 = vunpack.c.l.b16 %v909
    %v1116 = vunpack.c.l.b16 %v910
    %v1117 = vunpack.c.l.b16 %v911
    %v1118 = vunpack.c.l.b16 %v912
    %v1119 = vunpack.c.l.b16 %v913
    %v1120 = vunpack.c.l.b16 %v914
    %v1121 = vpack.c.b16 %v1106, %v1105
    %v1122 = vpack.c.b16 %v1108, %v1107
    %v1123 = vpack.c.b16 %v1110, %v1109
    %v1124 = vpack.c.b16 %v1112, %v1111
    %v1125 = vpack.c.b16 %v1114, %v1113
    %v1126 = vpack.c.b16 %v1116, %v1115
    %v1127 = vpack.c.b16 %v1118, %v1117
    %v1128 = vpack.c.b16 %v1120, %v1119
    %1137 = vmatprep.subr.bf16.mxu0 0
    %1138 = vmatpush1.bf16.msra.mxu0 %v1128
    %1139 = vmatprep.subr.bf16.mxu0 0
    %1140 = vmatpush1.bf16.msra.mxu0 %v1127
    %1141 = vmatprep.subr.bf16.mxu0 0
    %1142 = vmatpush1.bf16.msra.mxu0 %v1126
    %1143 = vmatprep.subr.bf16.mxu0 0
    %1144 = vmatpush1.bf16.msra.mxu0 %v1125
    %1145 = vmatprep.subr.bf16.mxu0 0
    %1146 = vmatpush1.bf16.msra.mxu0 %v1124
    %1147 = vmatprep.subr.bf16.mxu0 0
    %1148 = vmatpush1.bf16.msra.mxu0 %v1123
    %1149 = vmatprep.subr.bf16.mxu0 0
    %1150 = vmatpush1.bf16.msra.mxu0 %v1122
    %1151 = vmatprep.subr.bf16.mxu0 0
    %1152 = vmatpush1.bf16.msra.mxu0 %v1121
    %1153 = vmatprep.subr.bf16.mxu0 0
    %1154 = vmatpush2.bf16.msra.mxu0 0
    %1155 = vmatprep.subr.bf16.mxu0 0
    %1156 = vmatpush2.bf16.msra.mxu0 0
    %1157 = vmatprep.subr.bf16.mxu0 0
    %1158 = vmatpush2.bf16.msra.mxu0 0
    %1159 = vmatprep.subr.bf16.mxu0 0
    %1160 = vmatpush2.bf16.msra.mxu0 0
    %1161 = vmatprep.subr.bf16.mxu0 0
    %1162 = vmatpush2.bf16.msra.mxu0 0
    %1163 = vmatprep.subr.bf16.mxu0 0
    %1164 = vmatpush2.bf16.msra.mxu0 0
    %1165 = vmatprep.subr.bf16.mxu0 0
    %1166 = vmatpush2.bf16.msra.mxu0 0
    %1167 = vmatprep.subr.bf16.mxu0 0
    %1168 = vmatpush2.bf16.msra.mxu0 0
    %1169 = vmatprep.mubr.bf16.mxu0 0
    %1170 = vmatmul.mubr.bf16.gmra.mxu0 %v946
    %v1171 = vpop.f32.mrf.mxu0
    %v1172 = vadd.f32 %v1064, %v1171
    %v1173 = vpop.f32.mrf.mxu0
    %v1174 = vpop.f32.mrf.mxu0
    %v1175 = vadd.f32 %v1067, %v1174
    %v1176 = vpop.f32.mrf.mxu0
    %1177 = vmatprep.mubr.bf16.mxu0 0
    %1178 = vmatmul.mubr.bf16.gmra.mxu0 %v947
    %v1179 = vpop.f32.mrf.mxu0
    %v1180 = vadd.f32 %v1072, %v1179
    %v1181 = vpop.f32.mrf.mxu0
    %v1182 = vpop.f32.mrf.mxu0
    %v1183 = vadd.f32 %v1075, %v1182
    %v1184 = vpop.f32.mrf.mxu0
    %1185 = vmatprep.mubr.bf16.mxu0 0
    %1186 = vmatmul.mubr.bf16.gmra.mxu0 %v948
    %v1187 = vpop.f32.mrf.mxu0
    %v1188 = vadd.f32 %v1080, %v1187
    %v1189 = vpop.f32.mrf.mxu0
    %v1190 = vpop.f32.mrf.mxu0
    %v1191 = vadd.f32 %v1083, %v1190
    %v1192 = vpop.f32.mrf.mxu0
    %1193 = vdwg.mxu0
    %s1194 = scalar_lea.vmem [#allocation6], 128
    %v1195 = vld [vmem:[%s1194] sm:$0xf]
    %v1196 = vld [vmem:[%s1194 + $0x4] sm:$0xf]
    %v1197 = vld [vmem:[%s1194 + $0x8] sm:$0xf]
    %v1198 = vld [vmem:[%s1194 + $0xc] sm:$0xf]
    %v1199 = vld [vmem:[%s1194 + $0x10] sm:$0xf]
    %v1200 = vld [vmem:[%s1194 + $0x14] sm:$0xf]
    %v1201 = vld [vmem:[%s1194 + $0x18] sm:$0xf]
    %v1202 = vld [vmem:[%s1194 + $0x1c] sm:$0xf]
    %v1203 = vld [vmem:[%s1194 + $0x20] sm:$0xf]
    %v1204 = vld [vmem:[%s1194 + $0x24] sm:$0xf]
    %v1205 = vld [vmem:[%s1194 + $0x28] sm:$0xf]
    %v1206 = vld [vmem:[%s1194 + $0x2c] sm:$0xf]
    %v1207 = vld [vmem:[%s1194 + $0x30] sm:$0xf]
    %v1208 = vld [vmem:[%s1194 + $0x34] sm:$0xf]
    %v1209 = vld [vmem:[%s1194 + $0x38] sm:$0xf]
    %v1210 = vld [vmem:[%s1194 + $0x3c] sm:$0xf]
    %v1211 = vrot.slane %v946, 1
    %v1212 = vrot.slane %v947, 1
    %v1213 = vsel %vm632, %v1211, %v1212
    %v1214 = vrot.slane %v948, 1
    %v1215 = vsel %vm632, %v1212, %v1214
    %v1216 = vrot.slane %v949, 1
    %v1217 = vsel %vm632, %v1214, %v1216
    %v1237 = vunpack.c.l.b16 %v1195
    %v1238 = vunpack.c.l.b16 %v1196
    %v1239 = vunpack.c.l.b16 %v1197
    %v1240 = vunpack.c.l.b16 %v1198
    %v1241 = vunpack.c.l.b16 %v1199
    %v1242 = vunpack.c.l.b16 %v1200
    %v1243 = vunpack.c.l.b16 %v1201
    %v1244 = vunpack.c.l.b16 %v1202
    %v1245 = vunpack.c.l.b16 %v1203
    %v1246 = vunpack.c.l.b16 %v1204
    %v1247 = vunpack.c.l.b16 %v1205
    %v1248 = vunpack.c.l.b16 %v1206
    %v1249 = vunpack.c.l.b16 %v1207
    %v1250 = vunpack.c.l.b16 %v1208
    %v1251 = vunpack.c.l.b16 %v1209
    %v1252 = vunpack.c.l.b16 %v1210
    %v1253 = vpack.c.b16 %v1238, %v1237
    %v1254 = vpack.c.b16 %v1240, %v1239
    %v1255 = vpack.c.b16 %v1242, %v1241
    %v1256 = vpack.c.b16 %v1244, %v1243
    %v1257 = vpack.c.b16 %v1246, %v1245
    %v1258 = vpack.c.b16 %v1248, %v1247
    %v1259 = vpack.c.b16 %v1250, %v1249
    %v1260 = vpack.c.b16 %v1252, %v1251
    %1269 = vmatprep.subr.bf16.mxu0 0
    %1270 = vmatpush1.bf16.msra.mxu0 %v1260
    %1271 = vmatprep.subr.bf16.mxu0 0
    %1272 = vmatpush1.bf16.msra.mxu0 %v1259
    %1273 = vmatprep.subr.bf16.mxu0 0
    %1274 = vmatpush1.bf16.msra.mxu0 %v1258
    %1275 = vmatprep.subr.bf16.mxu0 0
    %1276 = vmatpush1.bf16.msra.mxu0 %v1257
    %1277 = vmatprep.subr.bf16.mxu0 0
    %1278 = vmatpush1.bf16.msra.mxu0 %v1256
    %1279 = vmatprep.subr.bf16.mxu0 0
    %1280 = vmatpush1.bf16.msra.mxu0 %v1255
    %1281 = vmatprep.subr.bf16.mxu0 0
    %1282 = vmatpush1.bf16.msra.mxu0 %v1254
    %1283 = vmatprep.subr.bf16.mxu0 0
    %1284 = vmatpush1.bf16.msra.mxu0 %v1253
    %1285 = vmatprep.subr.bf16.mxu0 0
    %1286 = vmatpush2.bf16.msra.mxu0 0
    %1287 = vmatprep.subr.bf16.mxu0 0
    %1288 = vmatpush2.bf16.msra.mxu0 0
    %1289 = vmatprep.subr.bf16.mxu0 0
    %1290 = vmatpush2.bf16.msra.mxu0 0
    %1291 = vmatprep.subr.bf16.mxu0 0
    %1292 = vmatpush2.bf16.msra.mxu0 0
    %1293 = vmatprep.subr.bf16.mxu0 0
    %1294 = vmatpush2.bf16.msra.mxu0 0
    %1295 = vmatprep.subr.bf16.mxu0 0
    %1296 = vmatpush2.bf16.msra.mxu0 0
    %1297 = vmatprep.subr.bf16.mxu0 0
    %1298 = vmatpush2.bf16.msra.mxu0 0
    %1299 = vmatprep.subr.bf16.mxu0 0
    %1300 = vmatpush2.bf16.msra.mxu0 0
    %1301 = vmatprep.mubr.bf16.mxu0 0
    %1302 = vmatmul.mubr.bf16.gmra.mxu0 %v1213
    %v1303 = vpop.f32.mrf.mxu0
    %v1304 = vadd.f32 0.0, %v1303
    %v1305 = vpop.f32.mrf.mxu0
    %v1306 = vpop.f32.mrf.mxu0
    %v1307 = vadd.f32 0.0, %v1306
    %v1308 = vpop.f32.mrf.mxu0
    %1309 = vmatprep.mubr.bf16.mxu0 0
    %1310 = vmatmul.mubr.bf16.gmra.mxu0 %v1215
    %v1311 = vpop.f32.mrf.mxu0
    %v1312 = vadd.f32 0.0, %v1311
    %v1313 = vpop.f32.mrf.mxu0
    %v1314 = vpop.f32.mrf.mxu0
    %v1315 = vadd.f32 0.0, %v1314
    %v1316 = vpop.f32.mrf.mxu0
    %1317 = vmatprep.mubr.bf16.mxu0 0
    %1318 = vmatmul.mubr.bf16.gmra.mxu0 %v1217
    %v1319 = vpop.f32.mrf.mxu0
    %v1320 = vadd.f32 0.0, %v1319
    %v1321 = vpop.f32.mrf.mxu0
    %v1322 = vpop.f32.mrf.mxu0
    %v1323 = vadd.f32 0.0, %v1322
    %v1324 = vpop.f32.mrf.mxu0
    %1325 = vdwg.mxu0
    %v1326 = vadd.f32 %v1172, %v1304
    %v1327 = vadd.f32 %v1175, %v1307
    %v1328 = vadd.f32 %v1180, %v1312
    %v1329 = vadd.f32 %v1183, %v1315
    %v1330 = vadd.f32 %v1188, %v1320
    %v1331 = vadd.f32 %v1191, %v1323
    %v1332 = vld [vmem:[%s5] sm:$0x1]
    %v1334 = vlaneseq
    %v1335 = vshrl.u32 %v1334, 7
    %v1336 = vsub.s32 0, %v1335
    %v1337 = vrot.slane %v1332, %v1336
    %v1339 = vmul.f32 %v1326, %v1337
    %v1340 = vmul.f32 %v1327, %v1337
    %v1341 = vmul.f32 %v1328, %v1337
    %v1342 = vmul.f32 %v1329, %v1337
    %v1343 = vmul.f32 %v1330, %v1337
    %v1344 = vmul.f32 %v1331, %v1337
    %v1345 = vld [vmem:[%s6] sm:$0x1]
    %v1347 = vlaneseq
    %v1348 = vshrl.u32 %v1347, 7
    %v1349 = vsub.s32 0, %v1348
    %v1350 = vrot.slane %v1345, %v1349
    %v1352 = vadd.f32 %v1339, %v1350
    %v1353 = vadd.f32 %v1340, %v1350
    %v1354 = vadd.f32 %v1341, %v1350
    %v1355 = vadd.f32 %v1342, %v1350
    %v1356 = vadd.f32 %v1343, %v1350
    %v1357 = vadd.f32 %v1344, %v1350
    %v1358 = vmax.f32 %v1352, 0.0
    %v1359 = vmax.f32 %v1353, 0.0
    %v1360 = vmax.f32 %v1354, 0.0
    %v1361 = vmax.f32 %v1355, 0.0
    %v1362 = vmax.f32 %v1356, 0.0
    %v1363 = vmax.f32 %v1357, 0.0
    %v1364 = vsel %vm792, %v1358, 0.0
    %v1365 = vsel %vm793, %v1359, 0.0
    %v1366 = vsel %vm794, %v1360, 0.0
    %v1367 = vsel %vm795, %v1361, 0.0
    %v1368 = vsel %vm796, %v1362, 0.0
    %v1369 = vsel %vm797, %v1363, 0.0
    %v1370 = vunpack.c.l.bf16 %v227
    %v1371 = vunpack.c.l.bf16 %v228
    %v1372 = vunpack.c.l.bf16 %v229
    %v1373 = vunpack.c.l.bf16 %v230
    %v1374 = vunpack.c.l.bf16 %v231
    %v1375 = vunpack.c.l.bf16 %v232
    %v1376 = vadd.f32 %v1364, %v1370
    %v1377 = vadd.f32 %v1365, %v1371
    %v1378 = vadd.f32 %v1366, %v1372
    %v1379 = vadd.f32 %v1367, %v1373
    %v1380 = vadd.f32 %v1368, %v1374
    %v1381 = vadd.f32 %v1369, %v1375
    %v1382 = vpack.c.bf16 %v1377, %v1376
    %v1383 = vpack.c.bf16 %v1379, %v1378
    %v1384 = vpack.c.bf16 %v1381, %v1380
    %v1388 = vunpack.c.l.b16 %v1382
    %v1389 = vunpack.c.h.b16 %v1382
    %v1390 = vunpack.c.l.b16 %v1383
    %v1391 = vunpack.c.h.b16 %v1383
    %v1392 = vunpack.c.l.b16 %v1384
    %v1393 = vunpack.c.h.b16 %v1384
    %v1394 = vpack.c.b16 %v1388, %v1388
    %v1395 = vpack.c.b16 %v1389, %v1389
    %v1396 = vpack.c.b16 %v1390, %v1390
    %v1397 = vpack.c.b16 %v1391, %v1391
    %v1398 = vpack.c.b16 %v1392, %v1392
    %v1399 = vpack.c.b16 %v1393, %v1393
    %v1401 = vshrl.u32 %v1394, 16
    %v1403 = vrot.slane %v1401, 7
    %v1404 = vshll.u32 %v1394, 16
    %v1406 = vor.u32 %v1403, %v1404
    %v1407 = vrot.slane %v1403, 4
    %v1409 = vshrl.u32 %v1395, 16
    %v1411 = vrot.slane %v1409, 7
    %v1412 = vshll.u32 %v1395, 16
    %v1414 = vor.u32 %v1411, %v1412
    %v1415 = vsel %vm235, %v1407, %v1414
    %v1416 = vrot.slane %v1411, 4
    %v1418 = vshrl.u32 %v1396, 16
    %v1420 = vrot.slane %v1418, 7
    %v1421 = vshll.u32 %v1396, 16
    %v1423 = vor.u32 %v1420, %v1421
    %v1424 = vsel %vm235, %v1416, %v1423
    %v1425 = vrot.slane %v1420, 4
    %v1427 = vshrl.u32 %v1397, 16
    %v1429 = vrot.slane %v1427, 7
    %v1430 = vshll.u32 %v1397, 16
    %v1432 = vor.u32 %v1429, %v1430
    %v1433 = vsel %vm235, %v1425, %v1432
    %v1434 = vrot.slane %v1429, 4
    %v1436 = vshrl.u32 %v1398, 16
    %v1438 = vrot.slane %v1436, 7
    %v1439 = vshll.u32 %v1398, 16
    %v1441 = vor.u32 %v1438, %v1439
    %v1442 = vsel %vm235, %v1434, %v1441
    %v1443 = vrot.slane %v1438, 4
    %v1445 = vshrl.u32 %v1399, 16
    %v1447 = vrot.slane %v1445, 7
    %v1448 = vshll.u32 %v1399, 16
    %v1450 = vor.u32 %v1447, %v1448
    %v1451 = vsel %vm235, %v1443, %v1450
    %v1452 = vrot.slane %v1447, 4
    %v1460 = vsel %vm298, %v1406, %v892
    %1461 = vst [vmem:[#allocation2] sm:$0xf] %v1460
    %1462 = vst [vmem:[#allocation2 + $0x4] sm:$0xf] %v1415
    %1463 = vst [vmem:[#allocation2 + $0x8] sm:$0xf] %v1424
    %1464 = vst [vmem:[#allocation2 + $0xc] sm:$0xf] %v1433
    %1465 = vst [vmem:[#allocation2 + $0x10] sm:$0xf] %v1442
    %1466 = vst [vmem:[#allocation2 + $0x14] sm:$0xf] %v1451
    %v1467 = vld [vmem:[#allocation2 + $0x18] sm:$0x1]
    %v1468 = vsel %vm308, %v1452, %v1467
    %1469 = vst [vmem:[#allocation2 + $0x18] sm:$0x1] %v1468
    %v1470 = vld [vmem:[#allocation2] sm:$0xf]
    %v1471 = vld [vmem:[#allocation2 + $0x4] sm:$0xf]
    %v1472 = vld [vmem:[#allocation2 + $0x8] sm:$0xf]
    %v1473 = vld [vmem:[#allocation2 + $0xc] sm:$0xf]
    %v1474 = vld [vmem:[#allocation2 + $0x10] sm:$0xf]
    %v1475 = vld [vmem:[#allocation2 + $0x14] sm:$0xf]
    %v1476 = vld [vmem:[#allocation2 + $0x18] sm:$0x1]
    %v1477 = vld [vmem:[#allocation8] sm:$0xf]
    %v1478 = vld [vmem:[#allocation8 + $0x4] sm:$0xf]
    %v1479 = vld [vmem:[#allocation8 + $0x8] sm:$0xf]
    %v1480 = vld [vmem:[#allocation8 + $0xc] sm:$0xf]
    %v1481 = vld [vmem:[#allocation8 + $0x10] sm:$0xf]
    %v1482 = vld [vmem:[#allocation8 + $0x14] sm:$0xf]
    %v1483 = vld [vmem:[#allocation8 + $0x18] sm:$0xf]
    %v1484 = vld [vmem:[#allocation8 + $0x1c] sm:$0xf]
    %v1485 = vld [vmem:[#allocation8 + $0x20] sm:$0xf]
    %v1486 = vld [vmem:[#allocation8 + $0x24] sm:$0xf]
    %v1487 = vld [vmem:[#allocation8 + $0x28] sm:$0xf]
    %v1488 = vld [vmem:[#allocation8 + $0x2c] sm:$0xf]
    %v1489 = vld [vmem:[#allocation8 + $0x30] sm:$0xf]
    %v1490 = vld [vmem:[#allocation8 + $0x34] sm:$0xf]
    %v1491 = vld [vmem:[#allocation8 + $0x38] sm:$0xf]
    %v1492 = vld [vmem:[#allocation8 + $0x3c] sm:$0xf]
    %s1493 = scalar_lea.vmem [#allocation8], 64
    %v1494 = vld [vmem:[%s1493] sm:$0xf]
    %v1495 = vld [vmem:[%s1493 + $0x4] sm:$0xf]
    %v1496 = vld [vmem:[%s1493 + $0x8] sm:$0xf]
    %v1497 = vld [vmem:[%s1493 + $0xc] sm:$0xf]
    %v1498 = vld [vmem:[%s1493 + $0x10] sm:$0xf]
    %v1499 = vld [vmem:[%s1493 + $0x14] sm:$0xf]
    %v1500 = vld [vmem:[%s1493 + $0x18] sm:$0xf]
    %v1501 = vld [vmem:[%s1493 + $0x1c] sm:$0xf]
    %v1502 = vld [vmem:[%s1493 + $0x20] sm:$0xf]
    %v1503 = vld [vmem:[%s1493 + $0x24] sm:$0xf]
    %v1504 = vld [vmem:[%s1493 + $0x28] sm:$0xf]
    %v1505 = vld [vmem:[%s1493 + $0x2c] sm:$0xf]
    %v1506 = vld [vmem:[%s1493 + $0x30] sm:$0xf]
    %v1507 = vld [vmem:[%s1493 + $0x34] sm:$0xf]
    %v1508 = vld [vmem:[%s1493 + $0x38] sm:$0xf]
    %v1509 = vld [vmem:[%s1493 + $0x3c] sm:$0xf]
    %v1517 = vunpack.c.l.b16 %v1470
    %v1518 = vunpack.c.l.b16 %v1471
    %v1519 = vunpack.c.l.b16 %v1472
    %v1520 = vunpack.c.l.b16 %v1473
    %v1521 = vunpack.c.l.b16 %v1474
    %v1522 = vunpack.c.l.b16 %v1475
    %v1523 = vunpack.c.l.b16 %v1476
    %v1524 = vpack.c.b16 %v1518, %v1517
    %v1525 = vpack.c.b16 %v1520, %v1519
    %v1526 = vpack.c.b16 %v1522, %v1521
    %v1527 = vpack.c.b16 %v1523, %v1523
    %v1529 = vshrl.u32 %v1524, 16
    %v1531 = vshll.u32 %v1524, 16
    %v1533 = vrot.slane %v1531, 1
    %v1534 = vor.u32 %v1529, %v1533
    %v1536 = vshll.u32 %v1525, 16
    %v1538 = vrot.slane %v1536, 1
    %v1539 = vsel %vm370, %v1534, %v1538
    %v1540 = vshrl.u32 %v1525, 16
    %v1542 = vor.u32 %v1540, %v1538
    %v1544 = vshll.u32 %v1526, 16
    %v1546 = vrot.slane %v1544, 1
    %v1547 = vsel %vm370, %v1542, %v1546
    %v1548 = vshrl.u32 %v1526, 16
    %v1550 = vor.u32 %v1548, %v1546
    %v1552 = vshll.u32 %v1527, 16
    %v1554 = vrot.slane %v1552, 1
    %v1555 = vsel %vm370, %v1550, %v1554
    %v1575 = vunpack.c.l.b16 %v1494
    %v1576 = vunpack.c.l.b16 %v1495
    %v1577 = vunpack.c.l.b16 %v1496
    %v1578 = vunpack.c.l.b16 %v1497
    %v1579 = vunpack.c.l.b16 %v1498
    %v1580 = vunpack.c.l.b16 %v1499
    %v1581 = vunpack.c.l.b16 %v1500
    %v1582 = vunpack.c.l.b16 %v1501
    %v1583 = vunpack.c.l.b16 %v1502
    %v1584 = vunpack.c.l.b16 %v1503
    %v1585 = vunpack.c.l.b16 %v1504
    %v1586 = vunpack.c.l.b16 %v1505
    %v1587 = vunpack.c.l.b16 %v1506
    %v1588 = vunpack.c.l.b16 %v1507
    %v1589 = vunpack.c.l.b16 %v1508
    %v1590 = vunpack.c.l.b16 %v1509
    %v1591 = vpack.c.b16 %v1576, %v1575
    %v1592 = vpack.c.b16 %v1578, %v1577
    %v1593 = vpack.c.b16 %v1580, %v1579
    %v1594 = vpack.c.b16 %v1582, %v1581
    %v1595 = vpack.c.b16 %v1584, %v1583
    %v1596 = vpack.c.b16 %v1586, %v1585
    %v1597 = vpack.c.b16 %v1588, %v1587
    %v1598 = vpack.c.b16 %v1590, %v1589
    %1607 = vmatprep.subr.bf16.mxu0 0
    %1608 = vmatpush1.bf16.msra.mxu0 %v1598
    %1609 = vmatprep.subr.bf16.mxu0 0
    %1610 = vmatpush1.bf16.msra.mxu0 %v1597
    %1611 = vmatprep.subr.bf16.mxu0 0
    %1612 = vmatpush1.bf16.msra.mxu0 %v1596
    %1613 = vmatprep.subr.bf16.mxu0 0
    %1614 = vmatpush1.bf16.msra.mxu0 %v1595
    %1615 = vmatprep.subr.bf16.mxu0 0
    %1616 = vmatpush1.bf16.msra.mxu0 %v1594
    %1617 = vmatprep.subr.bf16.mxu0 0
    %1618 = vmatpush1.bf16.msra.mxu0 %v1593
    %1619 = vmatprep.subr.bf16.mxu0 0
    %1620 = vmatpush1.bf16.msra.mxu0 %v1592
    %1621 = vmatprep.subr.bf16.mxu0 0
    %1622 = vmatpush1.bf16.msra.mxu0 %v1591
    %1623 = vmatprep.subr.bf16.mxu0 0
    %1624 = vmatpush2.bf16.msra.mxu0 0
    %1625 = vmatprep.subr.bf16.mxu0 0
    %1626 = vmatpush2.bf16.msra.mxu0 0
    %1627 = vmatprep.subr.bf16.mxu0 0
    %1628 = vmatpush2.bf16.msra.mxu0 0
    %1629 = vmatprep.subr.bf16.mxu0 0
    %1630 = vmatpush2.bf16.msra.mxu0 0
    %1631 = vmatprep.subr.bf16.mxu0 0
    %1632 = vmatpush2.bf16.msra.mxu0 0
    %1633 = vmatprep.subr.bf16.mxu0 0
    %1634 = vmatpush2.bf16.msra.mxu0 0
    %1635 = vmatprep.subr.bf16.mxu0 0
    %1636 = vmatpush2.bf16.msra.mxu0 0
    %1637 = vmatprep.subr.bf16.mxu0 0
    %1638 = vmatpush2.bf16.msra.mxu0 0
    %1639 = vmatprep.mubr.bf16.mxu0 0
    %1640 = vmatmul.mubr.bf16.gmra.mxu0 %v1539
    %v1641 = vpop.f32.mrf.mxu0
    %v1642 = vadd.f32 0.0, %v1641
    %v1643 = vpop.f32.mrf.mxu0
    %v1644 = vpop.f32.mrf.mxu0
    %v1645 = vadd.f32 0.0, %v1644
    %v1646 = vpop.f32.mrf.mxu0
    %1647 = vmatprep.mubr.bf16.mxu0 0
    %1648 = vmatmul.mubr.bf16.gmra.mxu0 %v1547
    %v1649 = vpop.f32.mrf.mxu0
    %v1650 = vadd.f32 0.0, %v1649
    %v1651 = vpop.f32.mrf.mxu0
    %v1652 = vpop.f32.mrf.mxu0
    %v1653 = vadd.f32 0.0, %v1652
    %v1654 = vpop.f32.mrf.mxu0
    %1655 = vmatprep.mubr.bf16.mxu0 0
    %1656 = vmatmul.mubr.bf16.gmra.mxu0 %v1555
    %v1657 = vpop.f32.mrf.mxu0
    %v1658 = vadd.f32 0.0, %v1657
    %v1659 = vpop.f32.mrf.mxu0
    %v1660 = vpop.f32.mrf.mxu0
    %v1661 = vadd.f32 0.0, %v1660
    %v1662 = vpop.f32.mrf.mxu0
    %1663 = vdwg.mxu0
    %v1683 = vunpack.c.l.b16 %v1477
    %v1684 = vunpack.c.l.b16 %v1478
    %v1685 = vunpack.c.l.b16 %v1479
    %v1686 = vunpack.c.l.b16 %v1480
    %v1687 = vunpack.c.l.b16 %v1481
    %v1688 = vunpack.c.l.b16 %v1482
    %v1689 = vunpack.c.l.b16 %v1483
    %v1690 = vunpack.c.l.b16 %v1484
    %v1691 = vunpack.c.l.b16 %v1485
    %v1692 = vunpack.c.l.b16 %v1486
    %v1693 = vunpack.c.l.b16 %v1487
    %v1694 = vunpack.c.l.b16 %v1488
    %v1695 = vunpack.c.l.b16 %v1489
    %v1696 = vunpack.c.l.b16 %v1490
    %v1697 = vunpack.c.l.b16 %v1491
    %v1698 = vunpack.c.l.b16 %v1492
    %v1699 = vpack.c.b16 %v1684, %v1683
    %v1700 = vpack.c.b16 %v1686, %v1685
    %v1701 = vpack.c.b16 %v1688, %v1687
    %v1702 = vpack.c.b16 %v1690, %v1689
    %v1703 = vpack.c.b16 %v1692, %v1691
    %v1704 = vpack.c.b16 %v1694, %v1693
    %v1705 = vpack.c.b16 %v1696, %v1695
    %v1706 = vpack.c.b16 %v1698, %v1697
    %1715 = vmatprep.subr.bf16.mxu0 0
    %1716 = vmatpush1.bf16.msra.mxu0 %v1706
    %1717 = vmatprep.subr.bf16.mxu0 0
    %1718 = vmatpush1.bf16.msra.mxu0 %v1705
    %1719 = vmatprep.subr.bf16.mxu0 0
    %1720 = vmatpush1.bf16.msra.mxu0 %v1704
    %1721 = vmatprep.subr.bf16.mxu0 0
    %1722 = vmatpush1.bf16.msra.mxu0 %v1703
    %1723 = vmatprep.subr.bf16.mxu0 0
    %1724 = vmatpush1.bf16.msra.mxu0 %v1702
    %1725 = vmatprep.subr.bf16.mxu0 0
    %1726 = vmatpush1.bf16.msra.mxu0 %v1701
    %1727 = vmatprep.subr.bf16.mxu0 0
    %1728 = vmatpush1.bf16.msra.mxu0 %v1700
    %1729 = vmatprep.subr.bf16.mxu0 0
    %1730 = vmatpush1.bf16.msra.mxu0 %v1699
    %1731 = vmatprep.subr.bf16.mxu0 0
    %1732 = vmatpush2.bf16.msra.mxu0 0
    %1733 = vmatprep.subr.bf16.mxu0 0
    %1734 = vmatpush2.bf16.msra.mxu0 0
    %1735 = vmatprep.subr.bf16.mxu0 0
    %1736 = vmatpush2.bf16.msra.mxu0 0
    %1737 = vmatprep.subr.bf16.mxu0 0
    %1738 = vmatpush2.bf16.msra.mxu0 0
    %1739 = vmatprep.subr.bf16.mxu0 0
    %1740 = vmatpush2.bf16.msra.mxu0 0
    %1741 = vmatprep.subr.bf16.mxu0 0
    %1742 = vmatpush2.bf16.msra.mxu0 0
    %1743 = vmatprep.subr.bf16.mxu0 0
    %1744 = vmatpush2.bf16.msra.mxu0 0
    %1745 = vmatprep.subr.bf16.mxu0 0
    %1746 = vmatpush2.bf16.msra.mxu0 0
    %1747 = vmatprep.mubr.bf16.mxu0 0
    %1748 = vmatmul.mubr.bf16.gmra.mxu0 %v1524
    %v1749 = vpop.f32.mrf.mxu0
    %v1750 = vadd.f32 %v1642, %v1749
    %v1751 = vpop.f32.mrf.mxu0
    %v1752 = vpop.f32.mrf.mxu0
    %v1753 = vadd.f32 %v1645, %v1752
    %v1754 = vpop.f32.mrf.mxu0
    %1755 = vmatprep.mubr.bf16.mxu0 0
    %1756 = vmatmul.mubr.bf16.gmra.mxu0 %v1525
    %v1757 = vpop.f32.mrf.mxu0
    %v1758 = vadd.f32 %v1650, %v1757
    %v1759 = vpop.f32.mrf.mxu0
    %v1760 = vpop.f32.mrf.mxu0
    %v1761 = vadd.f32 %v1653, %v1760
    %v1762 = vpop.f32.mrf.mxu0
    %1763 = vmatprep.mubr.bf16.mxu0 0
    %1764 = vmatmul.mubr.bf16.gmra.mxu0 %v1526
    %v1765 = vpop.f32.mrf.mxu0
    %v1766 = vadd.f32 %v1658, %v1765
    %v1767 = vpop.f32.mrf.mxu0
    %v1768 = vpop.f32.mrf.mxu0
    %v1769 = vadd.f32 %v1661, %v1768
    %v1770 = vpop.f32.mrf.mxu0
    %1771 = vdwg.mxu0
    %s1772 = scalar_lea.vmem [#allocation8], 128
    %v1773 = vld [vmem:[%s1772] sm:$0xf]
    %v1774 = vld [vmem:[%s1772 + $0x4] sm:$0xf]
    %v1775 = vld [vmem:[%s1772 + $0x8] sm:$0xf]
    %v1776 = vld [vmem:[%s1772 + $0xc] sm:$0xf]
    %v1777 = vld [vmem:[%s1772 + $0x10] sm:$0xf]
    %v1778 = vld [vmem:[%s1772 + $0x14] sm:$0xf]
    %v1779 = vld [vmem:[%s1772 + $0x18] sm:$0xf]
    %v1780 = vld [vmem:[%s1772 + $0x1c] sm:$0xf]
    %v1781 = vld [vmem:[%s1772 + $0x20] sm:$0xf]
    %v1782 = vld [vmem:[%s1772 + $0x24] sm:$0xf]
    %v1783 = vld [vmem:[%s1772 + $0x28] sm:$0xf]
    %v1784 = vld [vmem:[%s1772 + $0x2c] sm:$0xf]
    %v1785 = vld [vmem:[%s1772 + $0x30] sm:$0xf]
    %v1786 = vld [vmem:[%s1772 + $0x34] sm:$0xf]
    %v1787 = vld [vmem:[%s1772 + $0x38] sm:$0xf]
    %v1788 = vld [vmem:[%s1772 + $0x3c] sm:$0xf]
    %v1789 = vrot.slane %v1524, 1
    %v1790 = vrot.slane %v1525, 1
    %v1791 = vsel %vm632, %v1789, %v1790
    %v1792 = vrot.slane %v1526, 1
    %v1793 = vsel %vm632, %v1790, %v1792
    %v1794 = vrot.slane %v1527, 1
    %v1795 = vsel %vm632, %v1792, %v1794
    %v1815 = vunpack.c.l.b16 %v1773
    %v1816 = vunpack.c.l.b16 %v1774
    %v1817 = vunpack.c.l.b16 %v1775
    %v1818 = vunpack.c.l.b16 %v1776
    %v1819 = vunpack.c.l.b16 %v1777
    %v1820 = vunpack.c.l.b16 %v1778
    %v1821 = vunpack.c.l.b16 %v1779
    %v1822 = vunpack.c.l.b16 %v1780
    %v1823 = vunpack.c.l.b16 %v1781
    %v1824 = vunpack.c.l.b16 %v1782
    %v1825 = vunpack.c.l.b16 %v1783
    %v1826 = vunpack.c.l.b16 %v1784
    %v1827 = vunpack.c.l.b16 %v1785
    %v1828 = vunpack.c.l.b16 %v1786
    %v1829 = vunpack.c.l.b16 %v1787
    %v1830 = vunpack.c.l.b16 %v1788
    %v1831 = vpack.c.b16 %v1816, %v1815
    %v1832 = vpack.c.b16 %v1818, %v1817
    %v1833 = vpack.c.b16 %v1820, %v1819
    %v1834 = vpack.c.b16 %v1822, %v1821
    %v1835 = vpack.c.b16 %v1824, %v1823
    %v1836 = vpack.c.b16 %v1826, %v1825
    %v1837 = vpack.c.b16 %v1828, %v1827
    %v1838 = vpack.c.b16 %v1830, %v1829
    %1847 = vmatprep.subr.bf16.mxu0 0
    %1848 = vmatpush1.bf16.msra.mxu0 %v1838
    %1849 = vmatprep.subr.bf16.mxu0 0
    %1850 = vmatpush1.bf16.msra.mxu0 %v1837
    %1851 = vmatprep.subr.bf16.mxu0 0
    %1852 = vmatpush1.bf16.msra.mxu0 %v1836
    %1853 = vmatprep.subr.bf16.mxu0 0
    %1854 = vmatpush1.bf16.msra.mxu0 %v1835
    %1855 = vmatprep.subr.bf16.mxu0 0
    %1856 = vmatpush1.bf16.msra.mxu0 %v1834
    %1857 = vmatprep.subr.bf16.mxu0 0
    %1858 = vmatpush1.bf16.msra.mxu0 %v1833
    %1859 = vmatprep.subr.bf16.mxu0 0
    %1860 = vmatpush1.bf16.msra.mxu0 %v1832
    %1861 = vmatprep.subr.bf16.mxu0 0
    %1862 = vmatpush1.bf16.msra.mxu0 %v1831
    %1863 = vmatprep.subr.bf16.mxu0 0
    %1864 = vmatpush2.bf16.msra.mxu0 0
    %1865 = vmatprep.subr.bf16.mxu0 0
    %1866 = vmatpush2.bf16.msra.mxu0 0
    %1867 = vmatprep.subr.bf16.mxu0 0
    %1868 = vmatpush2.bf16.msra.mxu0 0
    %1869 = vmatprep.subr.bf16.mxu0 0
    %1870 = vmatpush2.bf16.msra.mxu0 0
    %1871 = vmatprep.subr.bf16.mxu0 0
    %1872 = vmatpush2.bf16.msra.mxu0 0
    %1873 = vmatprep.subr.bf16.mxu0 0
    %1874 = vmatpush2.bf16.msra.mxu0 0
    %1875 = vmatprep.subr.bf16.mxu0 0
    %1876 = vmatpush2.bf16.msra.mxu0 0
    %1877 = vmatprep.subr.bf16.mxu0 0
    %1878 = vmatpush2.bf16.msra.mxu0 0
    %1879 = vmatprep.mubr.bf16.mxu0 0
    %1880 = vmatmul.mubr.bf16.gmra.mxu0 %v1791
    %v1881 = vpop.f32.mrf.mxu0
    %v1882 = vadd.f32 0.0, %v1881
    %v1883 = vpop.f32.mrf.mxu0
    %v1884 = vpop.f32.mrf.mxu0
    %v1885 = vadd.f32 0.0, %v1884
    %v1886 = vpop.f32.mrf.mxu0
    %1887 = vmatprep.mubr.bf16.mxu0 0
    %1888 = vmatmul.mubr.bf16.gmra.mxu0 %v1793
    %v1889 = vpop.f32.mrf.mxu0
    %v1890 = vadd.f32 0.0, %v1889
    %v1891 = vpop.f32.mrf.mxu0
    %v1892 = vpop.f32.mrf.mxu0
    %v1893 = vadd.f32 0.0, %v1892
    %v1894 = vpop.f32.mrf.mxu0
    %1895 = vmatprep.mubr.bf16.mxu0 0
    %1896 = vmatmul.mubr.bf16.gmra.mxu0 %v1795
    %v1897 = vpop.f32.mrf.mxu0
    %v1898 = vadd.f32 0.0, %v1897
    %v1899 = vpop.f32.mrf.mxu0
    %v1900 = vpop.f32.mrf.mxu0
    %v1901 = vadd.f32 0.0, %v1900
    %v1902 = vpop.f32.mrf.mxu0
    %1903 = vdwg.mxu0
    %v1904 = vadd.f32 %v1750, %v1882
    %v1905 = vadd.f32 %v1753, %v1885
    %v1906 = vadd.f32 %v1758, %v1890
    %v1907 = vadd.f32 %v1761, %v1893
    %v1908 = vadd.f32 %v1766, %v1898
    %v1909 = vadd.f32 %v1769, %v1901
    %v1910 = vld [vmem:[%s8] sm:$0x1]
    %v1912 = vlaneseq
    %v1913 = vshrl.u32 %v1912, 7
    %v1914 = vsub.s32 0, %v1913
    %v1915 = vrot.slane %v1910, %v1914
    %v1917 = vmul.f32 %v1904, %v1915
    %v1918 = vmul.f32 %v1905, %v1915
    %v1919 = vmul.f32 %v1906, %v1915
    %v1920 = vmul.f32 %v1907, %v1915
    %v1921 = vmul.f32 %v1908, %v1915
    %v1922 = vmul.f32 %v1909, %v1915
    %v1923 = vld [vmem:[%s9] sm:$0x1]
    %v1925 = vlaneseq
    %v1926 = vshrl.u32 %v1925, 7
    %v1927 = vsub.s32 0, %v1926
    %v1928 = vrot.slane %v1923, %v1927
    %v1930 = vadd.f32 %v1917, %v1928
    %v1931 = vadd.f32 %v1918, %v1928
    %v1932 = vadd.f32 %v1919, %v1928
    %v1933 = vadd.f32 %v1920, %v1928
    %v1934 = vadd.f32 %v1921, %v1928
    %v1935 = vadd.f32 %v1922, %v1928
    %v1936 = vmax.f32 %v1930, 0.0
    %v1937 = vmax.f32 %v1931, 0.0
    %v1938 = vmax.f32 %v1932, 0.0
    %v1939 = vmax.f32 %v1933, 0.0
    %v1940 = vmax.f32 %v1934, 0.0
    %v1941 = vmax.f32 %v1935, 0.0
    %v1942 = vsel %vm792, %v1936, 0.0
    %v1943 = vsel %vm793, %v1937, 0.0
    %v1944 = vsel %vm794, %v1938, 0.0
    %v1945 = vsel %vm795, %v1939, 0.0
    %v1946 = vsel %vm796, %v1940, 0.0
    %v1947 = vsel %vm797, %v1941, 0.0
    %v1948 = vpack.c.bf16 %v1943, %v1942
    %v1949 = vpack.c.bf16 %v1945, %v1944
    %v1950 = vpack.c.bf16 %v1947, %v1946
    %v1954 = vunpack.c.l.b16 %v1948
    %v1955 = vunpack.c.h.b16 %v1948
    %v1956 = vunpack.c.l.b16 %v1949
    %v1957 = vunpack.c.h.b16 %v1949
    %v1958 = vunpack.c.l.b16 %v1950
    %v1959 = vunpack.c.h.b16 %v1950
    %v1960 = vpack.c.b16 %v1954, %v1954
    %v1961 = vpack.c.b16 %v1955, %v1955
    %v1962 = vpack.c.b16 %v1956, %v1956
    %v1963 = vpack.c.b16 %v1957, %v1957
    %v1964 = vpack.c.b16 %v1958, %v1958
    %v1965 = vpack.c.b16 %v1959, %v1959
    %v1967 = vshrl.u32 %v1960, 16
    %v1969 = vrot.slane %v1967, 7
    %v1970 = vshll.u32 %v1960, 16
    %v1972 = vor.u32 %v1969, %v1970
    %v1973 = vrot.slane %v1969, 4
    %v1975 = vshrl.u32 %v1961, 16
    %v1977 = vrot.slane %v1975, 7
    %v1978 = vshll.u32 %v1961, 16
    %v1980 = vor.u32 %v1977, %v1978
    %v1981 = vsel %vm235, %v1973, %v1980
    %v1982 = vrot.slane %v1977, 4
    %v1984 = vshrl.u32 %v1962, 16
    %v1986 = vrot.slane %v1984, 7
    %v1987 = vshll.u32 %v1962, 16
    %v1989 = vor.u32 %v1986, %v1987
    %v1990 = vsel %vm235, %v1982, %v1989
    %v1991 = vrot.slane %v1986, 4
    %v1993 = vshrl.u32 %v1963, 16
    %v1995 = vrot.slane %v1993, 7
    %v1996 = vshll.u32 %v1963, 16
    %v1998 = vor.u32 %v1995, %v1996
    %v1999 = vsel %vm235, %v1991, %v1998
    %v2000 = vrot.slane %v1995, 4
    %v2002 = vshrl.u32 %v1964, 16
    %v2004 = vrot.slane %v2002, 7
    %v2005 = vshll.u32 %v1964, 16
    %v2007 = vor.u32 %v2004, %v2005
    %v2008 = vsel %vm235, %v2000, %v2007
    %v2009 = vrot.slane %v2004, 4
    %v2011 = vshrl.u32 %v1965, 16
    %v2013 = vrot.slane %v2011, 7
    %v2014 = vshll.u32 %v1965, 16
    %v2016 = vor.u32 %v2013, %v2014
    %v2017 = vsel %vm235, %v2009, %v2016
    %v2018 = vrot.slane %v2013, 4
    %v2026 = vld [vmem:[#allocation3] sm:$0xf]
    %v2027 = vsel %vm298, %v1972, %v2026
    %2028 = vst [vmem:[#allocation3] sm:$0xf] %v2027
    %2029 = vst [vmem:[#allocation3 + $0x4] sm:$0xf] %v1981
    %2030 = vst [vmem:[#allocation3 + $0x8] sm:$0xf] %v1990
    %2031 = vst [vmem:[#allocation3 + $0xc] sm:$0xf] %v1999
    %2032 = vst [vmem:[#allocation3 + $0x10] sm:$0xf] %v2008
    %2033 = vst [vmem:[#allocation3 + $0x14] sm:$0xf] %v2017
    %v2034 = vld [vmem:[#allocation3 + $0x18] sm:$0x1]
    %v2035 = vsel %vm308, %v2018, %v2034
    %2036 = vst [vmem:[#allocation3 + $0x18] sm:$0x1] %v2035
    %v2037 = vld [vmem:[#allocation3] sm:$0xf]
    %v2038 = vld [vmem:[#allocation3 + $0x4] sm:$0xf]
    %v2039 = vld [vmem:[#allocation3 + $0x8] sm:$0xf]
    %v2040 = vld [vmem:[#allocation3 + $0xc] sm:$0xf]
    %v2041 = vld [vmem:[#allocation3 + $0x10] sm:$0xf]
    %v2042 = vld [vmem:[#allocation3 + $0x14] sm:$0xf]
    %v2043 = vld [vmem:[#allocation3 + $0x18] sm:$0x1]
    %v2044 = vld [vmem:[#allocation9] sm:$0xf]
    %v2045 = vld [vmem:[#allocation9 + $0x4] sm:$0xf]
    %v2046 = vld [vmem:[#allocation9 + $0x8] sm:$0xf]
    %v2047 = vld [vmem:[#allocation9 + $0xc] sm:$0xf]
    %v2048 = vld [vmem:[#allocation9 + $0x10] sm:$0xf]
    %v2049 = vld [vmem:[#allocation9 + $0x14] sm:$0xf]
    %v2050 = vld [vmem:[#allocation9 + $0x18] sm:$0xf]
    %v2051 = vld [vmem:[#allocation9 + $0x1c] sm:$0xf]
    %v2052 = vld [vmem:[#allocation9 + $0x20] sm:$0xf]
    %v2053 = vld [vmem:[#allocation9 + $0x24] sm:$0xf]
    %v2054 = vld [vmem:[#allocation9 + $0x28] sm:$0xf]
    %v2055 = vld [vmem:[#allocation9 + $0x2c] sm:$0xf]
    %v2056 = vld [vmem:[#allocation9 + $0x30] sm:$0xf]
    %v2057 = vld [vmem:[#allocation9 + $0x34] sm:$0xf]
    %v2058 = vld [vmem:[#allocation9 + $0x38] sm:$0xf]
    %v2059 = vld [vmem:[#allocation9 + $0x3c] sm:$0xf]
    %s2060 = scalar_lea.vmem [#allocation9], 64
    %v2061 = vld [vmem:[%s2060] sm:$0xf]
    %v2062 = vld [vmem:[%s2060 + $0x4] sm:$0xf]
    %v2063 = vld [vmem:[%s2060 + $0x8] sm:$0xf]
    %v2064 = vld [vmem:[%s2060 + $0xc] sm:$0xf]
    %v2065 = vld [vmem:[%s2060 + $0x10] sm:$0xf]
    %v2066 = vld [vmem:[%s2060 + $0x14] sm:$0xf]
    %v2067 = vld [vmem:[%s2060 + $0x18] sm:$0xf]
    %v2068 = vld [vmem:[%s2060 + $0x1c] sm:$0xf]
    %v2069 = vld [vmem:[%s2060 + $0x20] sm:$0xf]
    %v2070 = vld [vmem:[%s2060 + $0x24] sm:$0xf]
    %v2071 = vld [vmem:[%s2060 + $0x28] sm:$0xf]
    %v2072 = vld [vmem:[%s2060 + $0x2c] sm:$0xf]
    %v2073 = vld [vmem:[%s2060 + $0x30] sm:$0xf]
    %v2074 = vld [vmem:[%s2060 + $0x34] sm:$0xf]
    %v2075 = vld [vmem:[%s2060 + $0x38] sm:$0xf]
    %v2076 = vld [vmem:[%s2060 + $0x3c] sm:$0xf]
    %v2084 = vunpack.c.l.b16 %v2037
    %v2085 = vunpack.c.l.b16 %v2038
    %v2086 = vunpack.c.l.b16 %v2039
    %v2087 = vunpack.c.l.b16 %v2040
    %v2088 = vunpack.c.l.b16 %v2041
    %v2089 = vunpack.c.l.b16 %v2042
    %v2090 = vunpack.c.l.b16 %v2043
    %v2091 = vpack.c.b16 %v2085, %v2084
    %v2092 = vpack.c.b16 %v2087, %v2086
    %v2093 = vpack.c.b16 %v2089, %v2088
    %v2094 = vpack.c.b16 %v2090, %v2090
    %v2096 = vshrl.u32 %v2091, 16
    %v2098 = vshll.u32 %v2091, 16
    %v2100 = vrot.slane %v2098, 1
    %v2101 = vor.u32 %v2096, %v2100
    %v2103 = vshll.u32 %v2092, 16
    %v2105 = vrot.slane %v2103, 1
    %v2106 = vsel %vm370, %v2101, %v2105
    %v2107 = vshrl.u32 %v2092, 16
    %v2109 = vor.u32 %v2107, %v2105
    %v2111 = vshll.u32 %v2093, 16
    %v2113 = vrot.slane %v2111, 1
    %v2114 = vsel %vm370, %v2109, %v2113
    %v2115 = vshrl.u32 %v2093, 16
    %v2117 = vor.u32 %v2115, %v2113
    %v2119 = vshll.u32 %v2094, 16
    %v2121 = vrot.slane %v2119, 1
    %v2122 = vsel %vm370, %v2117, %v2121
    %v2142 = vunpack.c.l.b16 %v2061
    %v2143 = vunpack.c.l.b16 %v2062
    %v2144 = vunpack.c.l.b16 %v2063
    %v2145 = vunpack.c.l.b16 %v2064
    %v2146 = vunpack.c.l.b16 %v2065
    %v2147 = vunpack.c.l.b16 %v2066
    %v2148 = vunpack.c.l.b16 %v2067
    %v2149 = vunpack.c.l.b16 %v2068
    %v2150 = vunpack.c.l.b16 %v2069
    %v2151 = vunpack.c.l.b16 %v2070
    %v2152 = vunpack.c.l.b16 %v2071
    %v2153 = vunpack.c.l.b16 %v2072
    %v2154 = vunpack.c.l.b16 %v2073
    %v2155 = vunpack.c.l.b16 %v2074
    %v2156 = vunpack.c.l.b16 %v2075
    %v2157 = vunpack.c.l.b16 %v2076
    %v2158 = vpack.c.b16 %v2143, %v2142
    %v2159 = vpack.c.b16 %v2145, %v2144
    %v2160 = vpack.c.b16 %v2147, %v2146
    %v2161 = vpack.c.b16 %v2149, %v2148
    %v2162 = vpack.c.b16 %v2151, %v2150
    %v2163 = vpack.c.b16 %v2153, %v2152
    %v2164 = vpack.c.b16 %v2155, %v2154
    %v2165 = vpack.c.b16 %v2157, %v2156
    %2174 = vmatprep.subr.bf16.mxu0 0
    %2175 = vmatpush1.bf16.msra.mxu0 %v2165
    %2176 = vmatprep.subr.bf16.mxu0 0
    %2177 = vmatpush1.bf16.msra.mxu0 %v2164
    %2178 = vmatprep.subr.bf16.mxu0 0
    %2179 = vmatpush1.bf16.msra.mxu0 %v2163
    %2180 = vmatprep.subr.bf16.mxu0 0
    %2181 = vmatpush1.bf16.msra.mxu0 %v2162
    %2182 = vmatprep.subr.bf16.mxu0 0
    %2183 = vmatpush1.bf16.msra.mxu0 %v2161
    %2184 = vmatprep.subr.bf16.mxu0 0
    %2185 = vmatpush1.bf16.msra.mxu0 %v2160
    %2186 = vmatprep.subr.bf16.mxu0 0
    %2187 = vmatpush1.bf16.msra.mxu0 %v2159
    %2188 = vmatprep.subr.bf16.mxu0 0
    %2189 = vmatpush1.bf16.msra.mxu0 %v2158
    %2190 = vmatprep.subr.bf16.mxu0 0
    %2191 = vmatpush2.bf16.msra.mxu0 0
    %2192 = vmatprep.subr.bf16.mxu0 0
    %2193 = vmatpush2.bf16.msra.mxu0 0
    %2194 = vmatprep.subr.bf16.mxu0 0
    %2195 = vmatpush2.bf16.msra.mxu0 0
    %2196 = vmatprep.subr.bf16.mxu0 0
    %2197 = vmatpush2.bf16.msra.mxu0 0
    %2198 = vmatprep.subr.bf16.mxu0 0
    %2199 = vmatpush2.bf16.msra.mxu0 0
    %2200 = vmatprep.subr.bf16.mxu0 0
    %2201 = vmatpush2.bf16.msra.mxu0 0
    %2202 = vmatprep.subr.bf16.mxu0 0
    %2203 = vmatpush2.bf16.msra.mxu0 0
    %2204 = vmatprep.subr.bf16.mxu0 0
    %2205 = vmatpush2.bf16.msra.mxu0 0
    %2206 = vmatprep.mubr.bf16.mxu0 0
    %2207 = vmatmul.mubr.bf16.gmra.mxu0 %v2106
    %v2208 = vpop.f32.mrf.mxu0
    %v2209 = vadd.f32 0.0, %v2208
    %v2210 = vpop.f32.mrf.mxu0
    %v2211 = vpop.f32.mrf.mxu0
    %v2212 = vadd.f32 0.0, %v2211
    %v2213 = vpop.f32.mrf.mxu0
    %2214 = vmatprep.mubr.bf16.mxu0 0
    %2215 = vmatmul.mubr.bf16.gmra.mxu0 %v2114
    %v2216 = vpop.f32.mrf.mxu0
    %v2217 = vadd.f32 0.0, %v2216
    %v2218 = vpop.f32.mrf.mxu0
    %v2219 = vpop.f32.mrf.mxu0
    %v2220 = vadd.f32 0.0, %v2219
    %v2221 = vpop.f32.mrf.mxu0
    %2222 = vmatprep.mubr.bf16.mxu0 0
    %2223 = vmatmul.mubr.bf16.gmra.mxu0 %v2122
    %v2224 = vpop.f32.mrf.mxu0
    %v2225 = vadd.f32 0.0, %v2224
    %v2226 = vpop.f32.mrf.mxu0
    %v2227 = vpop.f32.mrf.mxu0
    %v2228 = vadd.f32 0.0, %v2227
    %v2229 = vpop.f32.mrf.mxu0
    %2230 = vdwg.mxu0
    %v2250 = vunpack.c.l.b16 %v2044
    %v2251 = vunpack.c.l.b16 %v2045
    %v2252 = vunpack.c.l.b16 %v2046
    %v2253 = vunpack.c.l.b16 %v2047
    %v2254 = vunpack.c.l.b16 %v2048
    %v2255 = vunpack.c.l.b16 %v2049
    %v2256 = vunpack.c.l.b16 %v2050
    %v2257 = vunpack.c.l.b16 %v2051
    %v2258 = vunpack.c.l.b16 %v2052
    %v2259 = vunpack.c.l.b16 %v2053
    %v2260 = vunpack.c.l.b16 %v2054
    %v2261 = vunpack.c.l.b16 %v2055
    %v2262 = vunpack.c.l.b16 %v2056
    %v2263 = vunpack.c.l.b16 %v2057
    %v2264 = vunpack.c.l.b16 %v2058
    %v2265 = vunpack.c.l.b16 %v2059
    %v2266 = vpack.c.b16 %v2251, %v2250
    %v2267 = vpack.c.b16 %v2253, %v2252
    %v2268 = vpack.c.b16 %v2255, %v2254
    %v2269 = vpack.c.b16 %v2257, %v2256
    %v2270 = vpack.c.b16 %v2259, %v2258
    %v2271 = vpack.c.b16 %v2261, %v2260
    %v2272 = vpack.c.b16 %v2263, %v2262
    %v2273 = vpack.c.b16 %v2265, %v2264
    %2282 = vmatprep.subr.bf16.mxu0 0
    %2283 = vmatpush1.bf16.msra.mxu0 %v2273
    %2284 = vmatprep.subr.bf16.mxu0 0
    %2285 = vmatpush1.bf16.msra.mxu0 %v2272
    %2286 = vmatprep.subr.bf16.mxu0 0
    %2287 = vmatpush1.bf16.msra.mxu0 %v2271
    %2288 = vmatprep.subr.bf16.mxu0 0
    %2289 = vmatpush1.bf16.msra.mxu0 %v2270
    %2290 = vmatprep.subr.bf16.mxu0 0
    %2291 = vmatpush1.bf16.msra.mxu0 %v2269
    %2292 = vmatprep.subr.bf16.mxu0 0
    %2293 = vmatpush1.bf16.msra.mxu0 %v2268
    %2294 = vmatprep.subr.bf16.mxu0 0
    %2295 = vmatpush1.bf16.msra.mxu0 %v2267
    %2296 = vmatprep.subr.bf16.mxu0 0
    %2297 = vmatpush1.bf16.msra.mxu0 %v2266
    %2298 = vmatprep.subr.bf16.mxu0 0
    %2299 = vmatpush2.bf16.msra.mxu0 0
    %2300 = vmatprep.subr.bf16.mxu0 0
    %2301 = vmatpush2.bf16.msra.mxu0 0
    %2302 = vmatprep.subr.bf16.mxu0 0
    %2303 = vmatpush2.bf16.msra.mxu0 0
    %2304 = vmatprep.subr.bf16.mxu0 0
    %2305 = vmatpush2.bf16.msra.mxu0 0
    %2306 = vmatprep.subr.bf16.mxu0 0
    %2307 = vmatpush2.bf16.msra.mxu0 0
    %2308 = vmatprep.subr.bf16.mxu0 0
    %2309 = vmatpush2.bf16.msra.mxu0 0
    %2310 = vmatprep.subr.bf16.mxu0 0
    %2311 = vmatpush2.bf16.msra.mxu0 0
    %2312 = vmatprep.subr.bf16.mxu0 0
    %2313 = vmatpush2.bf16.msra.mxu0 0
    %2314 = vmatprep.mubr.bf16.mxu0 0
    %2315 = vmatmul.mubr.bf16.gmra.mxu0 %v2091
    %v2316 = vpop.f32.mrf.mxu0
    %v2317 = vadd.f32 %v2209, %v2316
    %v2318 = vpop.f32.mrf.mxu0
    %v2319 = vpop.f32.mrf.mxu0
    %v2320 = vadd.f32 %v2212, %v2319
    %v2321 = vpop.f32.mrf.mxu0
    %2322 = vmatprep.mubr.bf16.mxu0 0
    %2323 = vmatmul.mubr.bf16.gmra.mxu0 %v2092
    %v2324 = vpop.f32.mrf.mxu0
    %v2325 = vadd.f32 %v2217, %v2324
    %v2326 = vpop.f32.mrf.mxu0
    %v2327 = vpop.f32.mrf.mxu0
    %v2328 = vadd.f32 %v2220, %v2327
    %v2329 = vpop.f32.mrf.mxu0
    %2330 = vmatprep.mubr.bf16.mxu0 0
    %2331 = vmatmul.mubr.bf16.gmra.mxu0 %v2093
    %v2332 = vpop.f32.mrf.mxu0
    %v2333 = vadd.f32 %v2225, %v2332
    %v2334 = vpop.f32.mrf.mxu0
    %v2335 = vpop.f32.mrf.mxu0
    %v2336 = vadd.f32 %v2228, %v2335
    %v2337 = vpop.f32.mrf.mxu0
    %2338 = vdwg.mxu0
    %s2339 = scalar_lea.vmem [#allocation9], 128
    %v2340 = vld [vmem:[%s2339] sm:$0xf]
    %v2341 = vld [vmem:[%s2339 + $0x4] sm:$0xf]
    %v2342 = vld [vmem:[%s2339 + $0x8] sm:$0xf]
    %v2343 = vld [vmem:[%s2339 + $0xc] sm:$0xf]
    %v2344 = vld [vmem:[%s2339 + $0x10] sm:$0xf]
    %v2345 = vld [vmem:[%s2339 + $0x14] sm:$0xf]
    %v2346 = vld [vmem:[%s2339 + $0x18] sm:$0xf]
    %v2347 = vld [vmem:[%s2339 + $0x1c] sm:$0xf]
    %v2348 = vld [vmem:[%s2339 + $0x20] sm:$0xf]
    %v2349 = vld [vmem:[%s2339 + $0x24] sm:$0xf]
    %v2350 = vld [vmem:[%s2339 + $0x28] sm:$0xf]
    %v2351 = vld [vmem:[%s2339 + $0x2c] sm:$0xf]
    %v2352 = vld [vmem:[%s2339 + $0x30] sm:$0xf]
    %v2353 = vld [vmem:[%s2339 + $0x34] sm:$0xf]
    %v2354 = vld [vmem:[%s2339 + $0x38] sm:$0xf]
    %v2355 = vld [vmem:[%s2339 + $0x3c] sm:$0xf]
    %v2356 = vrot.slane %v2091, 1
    %v2357 = vrot.slane %v2092, 1
    %v2358 = vsel %vm632, %v2356, %v2357
    %v2359 = vrot.slane %v2093, 1
    %v2360 = vsel %vm632, %v2357, %v2359
    %v2361 = vrot.slane %v2094, 1
    %v2362 = vsel %vm632, %v2359, %v2361
    %v2382 = vunpack.c.l.b16 %v2340
    %v2383 = vunpack.c.l.b16 %v2341
    %v2384 = vunpack.c.l.b16 %v2342
    %v2385 = vunpack.c.l.b16 %v2343
    %v2386 = vunpack.c.l.b16 %v2344
    %v2387 = vunpack.c.l.b16 %v2345
    %v2388 = vunpack.c.l.b16 %v2346
    %v2389 = vunpack.c.l.b16 %v2347
    %v2390 = vunpack.c.l.b16 %v2348
    %v2391 = vunpack.c.l.b16 %v2349
    %v2392 = vunpack.c.l.b16 %v2350
    %v2393 = vunpack.c.l.b16 %v2351
    %v2394 = vunpack.c.l.b16 %v2352
    %v2395 = vunpack.c.l.b16 %v2353
    %v2396 = vunpack.c.l.b16 %v2354
    %v2397 = vunpack.c.l.b16 %v2355
    %v2398 = vpack.c.b16 %v2383, %v2382
    %v2399 = vpack.c.b16 %v2385, %v2384
    %v2400 = vpack.c.b16 %v2387, %v2386
    %v2401 = vpack.c.b16 %v2389, %v2388
    %v2402 = vpack.c.b16 %v2391, %v2390
    %v2403 = vpack.c.b16 %v2393, %v2392
    %v2404 = vpack.c.b16 %v2395, %v2394
    %v2405 = vpack.c.b16 %v2397, %v2396
    %2414 = vmatprep.subr.bf16.mxu0 0
    %2415 = vmatpush1.bf16.msra.mxu0 %v2405
    %2416 = vmatprep.subr.bf16.mxu0 0
    %2417 = vmatpush1.bf16.msra.mxu0 %v2404
    %2418 = vmatprep.subr.bf16.mxu0 0
    %2419 = vmatpush1.bf16.msra.mxu0 %v2403
    %2420 = vmatprep.subr.bf16.mxu0 0
    %2421 = vmatpush1.bf16.msra.mxu0 %v2402
    %2422 = vmatprep.subr.bf16.mxu0 0
    %2423 = vmatpush1.bf16.msra.mxu0 %v2401
    %2424 = vmatprep.subr.bf16.mxu0 0
    %2425 = vmatpush1.bf16.msra.mxu0 %v2400
    %2426 = vmatprep.subr.bf16.mxu0 0
    %2427 = vmatpush1.bf16.msra.mxu0 %v2399
    %2428 = vmatprep.subr.bf16.mxu0 0
    %2429 = vmatpush1.bf16.msra.mxu0 %v2398
    %2430 = vmatprep.subr.bf16.mxu0 0
    %2431 = vmatpush2.bf16.msra.mxu0 0
    %2432 = vmatprep.subr.bf16.mxu0 0
    %2433 = vmatpush2.bf16.msra.mxu0 0
    %2434 = vmatprep.subr.bf16.mxu0 0
    %2435 = vmatpush2.bf16.msra.mxu0 0
    %2436 = vmatprep.subr.bf16.mxu0 0
    %2437 = vmatpush2.bf16.msra.mxu0 0
    %2438 = vmatprep.subr.bf16.mxu0 0
    %2439 = vmatpush2.bf16.msra.mxu0 0
    %2440 = vmatprep.subr.bf16.mxu0 0
    %2441 = vmatpush2.bf16.msra.mxu0 0
    %2442 = vmatprep.subr.bf16.mxu0 0
    %2443 = vmatpush2.bf16.msra.mxu0 0
    %2444 = vmatprep.subr.bf16.mxu0 0
    %2445 = vmatpush2.bf16.msra.mxu0 0
    %2446 = vmatprep.mubr.bf16.mxu0 0
    %2447 = vmatmul.mubr.bf16.gmra.mxu0 %v2358
    %v2448 = vpop.f32.mrf.mxu0
    %v2449 = vadd.f32 0.0, %v2448
    %v2450 = vpop.f32.mrf.mxu0
    %v2451 = vpop.f32.mrf.mxu0
    %v2452 = vadd.f32 0.0, %v2451
    %v2453 = vpop.f32.mrf.mxu0
    %2454 = vmatprep.mubr.bf16.mxu0 0
    %2455 = vmatmul.mubr.bf16.gmra.mxu0 %v2360
    %v2456 = vpop.f32.mrf.mxu0
    %v2457 = vadd.f32 0.0, %v2456
    %v2458 = vpop.f32.mrf.mxu0
    %v2459 = vpop.f32.mrf.mxu0
    %v2460 = vadd.f32 0.0, %v2459
    %v2461 = vpop.f32.mrf.mxu0
    %2462 = vmatprep.mubr.bf16.mxu0 0
    %2463 = vmatmul.mubr.bf16.gmra.mxu0 %v2362
    %v2464 = vpop.f32.mrf.mxu0
    %v2465 = vadd.f32 0.0, %v2464
    %v2466 = vpop.f32.mrf.mxu0
    %v2467 = vpop.f32.mrf.mxu0
    %v2468 = vadd.f32 0.0, %v2467
    %v2469 = vpop.f32.mrf.mxu0
    %2470 = vdwg.mxu0
    %v2471 = vadd.f32 %v2317, %v2449
    %v2472 = vadd.f32 %v2320, %v2452
    %v2473 = vadd.f32 %v2325, %v2457
    %v2474 = vadd.f32 %v2328, %v2460
    %v2475 = vadd.f32 %v2333, %v2465
    %v2476 = vadd.f32 %v2336, %v2468
    %v2477 = vld [vmem:[%s11] sm:$0x1]
    %v2479 = vlaneseq
    %v2480 = vshrl.u32 %v2479, 7
    %v2481 = vsub.s32 0, %v2480
    %v2482 = vrot.slane %v2477, %v2481
    %v2484 = vmul.f32 %v2471, %v2482
    %v2485 = vmul.f32 %v2472, %v2482
    %v2486 = vmul.f32 %v2473, %v2482
    %v2487 = vmul.f32 %v2474, %v2482
    %v2488 = vmul.f32 %v2475, %v2482
    %v2489 = vmul.f32 %v2476, %v2482
    %v2490 = vld [vmem:[%s12] sm:$0x1]
    %v2492 = vlaneseq
    %v2493 = vshrl.u32 %v2492, 7
    %v2494 = vsub.s32 0, %v2493
    %v2495 = vrot.slane %v2490, %v2494
    %v2497 = vadd.f32 %v2484, %v2495
    %v2498 = vadd.f32 %v2485, %v2495
    %v2499 = vadd.f32 %v2486, %v2495
    %v2500 = vadd.f32 %v2487, %v2495
    %v2501 = vadd.f32 %v2488, %v2495
    %v2502 = vadd.f32 %v2489, %v2495
    %v2503 = vmax.f32 %v2497, 0.0
    %v2504 = vmax.f32 %v2498, 0.0
    %v2505 = vmax.f32 %v2499, 0.0
    %v2506 = vmax.f32 %v2500, 0.0
    %v2507 = vmax.f32 %v2501, 0.0
    %v2508 = vmax.f32 %v2502, 0.0
    %v2509 = vsel %vm792, %v2503, 0.0
    %v2510 = vsel %vm793, %v2504, 0.0
    %v2511 = vsel %vm794, %v2505, 0.0
    %v2512 = vsel %vm795, %v2506, 0.0
    %v2513 = vsel %vm796, %v2507, 0.0
    %v2514 = vsel %vm797, %v2508, 0.0
    %v2515 = vpack.c.bf16 %v2510, %v2509
    %v2516 = vpack.c.bf16 %v2512, %v2511
    %v2517 = vpack.c.bf16 %v2514, %v2513
    %v2518 = vld [vmem:[%s13] sm:$0xf]
    %v2519 = vld [vmem:[%s13 + $0x4] sm:$0xf]
    %v2520 = vld [vmem:[%s13 + $0x8] sm:$0xf]
    %v2521 = vld [vmem:[%s13 + $0xc] sm:$0xf]
    %v2522 = vld [vmem:[%s13 + $0x10] sm:$0xf]
    %v2523 = vld [vmem:[%s13 + $0x14] sm:$0xf]
    %v2524 = vld [vmem:[%s13 + $0x18] sm:$0xf]
    %v2525 = vld [vmem:[%s13 + $0x1c] sm:$0xf]
    %v2526 = vld [vmem:[%s13 + $0x20] sm:$0xf]
    %v2527 = vld [vmem:[%s13 + $0x24] sm:$0xf]
    %v2528 = vld [vmem:[%s13 + $0x28] sm:$0xf]
    %v2529 = vld [vmem:[%s13 + $0x2c] sm:$0xf]
    %v2530 = vld [vmem:[%s13 + $0x30] sm:$0xf]
    %v2531 = vld [vmem:[%s13 + $0x34] sm:$0xf]
    %v2532 = vld [vmem:[%s13 + $0x38] sm:$0xf]
    %v2533 = vld [vmem:[%s13 + $0x3c] sm:$0xf]
    %v2534 = vld [vmem:[%s14] sm:$0x1]
    %v2536 = vlaneseq
    %v2537 = vshrl.u32 %v2536, 7
    %v2538 = vsub.s32 0, %v2537
    %v2539 = vrot.slane %v2534, %v2538
    %v2557 = vunpack.c.l.b16 %v2518
    %v2558 = vunpack.c.l.b16 %v2519
    %v2559 = vunpack.c.l.b16 %v2520
    %v2560 = vunpack.c.l.b16 %v2521
    %v2561 = vunpack.c.l.b16 %v2522
    %v2562 = vunpack.c.l.b16 %v2523
    %v2563 = vunpack.c.l.b16 %v2524
    %v2564 = vunpack.c.l.b16 %v2525
    %v2565 = vunpack.c.l.b16 %v2526
    %v2566 = vunpack.c.l.b16 %v2527
    %v2567 = vunpack.c.l.b16 %v2528
    %v2568 = vunpack.c.l.b16 %v2529
    %v2569 = vunpack.c.l.b16 %v2530
    %v2570 = vunpack.c.l.b16 %v2531
    %v2571 = vunpack.c.l.b16 %v2532
    %v2572 = vunpack.c.l.b16 %v2533
    %v2573 = vpack.c.b16 %v2558, %v2557
    %v2574 = vpack.c.b16 %v2560, %v2559
    %v2575 = vpack.c.b16 %v2562, %v2561
    %v2576 = vpack.c.b16 %v2564, %v2563
    %v2577 = vpack.c.b16 %v2566, %v2565
    %v2578 = vpack.c.b16 %v2568, %v2567
    %v2579 = vpack.c.b16 %v2570, %v2569
    %v2580 = vpack.c.b16 %v2572, %v2571
    %2589 = vmatprep.subr.bf16.mxu0 0
    %2590 = vmatpush1.bf16.msra.mxu0 %v2580
    %2591 = vmatprep.subr.bf16.mxu0 0
    %2592 = vmatpush1.bf16.msra.mxu0 %v2579
    %2593 = vmatprep.subr.bf16.mxu0 0
    %2594 = vmatpush1.bf16.msra.mxu0 %v2578
    %2595 = vmatprep.subr.bf16.mxu0 0
    %2596 = vmatpush1.bf16.msra.mxu0 %v2577
    %2597 = vmatprep.subr.bf16.mxu0 0
    %2598 = vmatpush1.bf16.msra.mxu0 %v2576
    %2599 = vmatprep.subr.bf16.mxu0 0
    %2600 = vmatpush1.bf16.msra.mxu0 %v2575
    %2601 = vmatprep.subr.bf16.mxu0 0
    %2602 = vmatpush1.bf16.msra.mxu0 %v2574
    %2603 = vmatprep.subr.bf16.mxu0 0
    %2604 = vmatpush1.bf16.msra.mxu0 %v2573
    %2605 = vmatprep.subr.bf16.mxu0 0
    %2606 = vmatpush2.bf16.msra.mxu0 0
    %2607 = vmatprep.subr.bf16.mxu0 0
    %2608 = vmatpush2.bf16.msra.mxu0 0
    %2609 = vmatprep.subr.bf16.mxu0 0
    %2610 = vmatpush2.bf16.msra.mxu0 0
    %2611 = vmatprep.subr.bf16.mxu0 0
    %2612 = vmatpush2.bf16.msra.mxu0 0
    %2613 = vmatprep.subr.bf16.mxu0 0
    %2614 = vmatpush2.bf16.msra.mxu0 0
    %2615 = vmatprep.subr.bf16.mxu0 0
    %2616 = vmatpush2.bf16.msra.mxu0 0
    %2617 = vmatprep.subr.bf16.mxu0 0
    %2618 = vmatpush2.bf16.msra.mxu0 0
    %2619 = vmatprep.subr.bf16.mxu0 0
    %2620 = vmatpush2.bf16.msra.mxu0 0
    %2621 = vmatprep.mubr.bf16.mxu0 0
    %2622 = vmatmul.mubr.bf16.gmra.mxu0 %v2515
    %v2623 = vpop.f32.mrf.mxu0
    %v2624 = vadd.f32 %v2539, %v2623
    %v2625 = vpop.f32.mrf.mxu0
    %v2626 = vpop.f32.mrf.mxu0
    %v2627 = vadd.f32 %v2539, %v2626
    %v2628 = vpop.f32.mrf.mxu0
    %2629 = vmatprep.mubr.bf16.mxu0 0
    %2630 = vmatmul.mubr.bf16.gmra.mxu0 %v2516
    %v2631 = vpop.f32.mrf.mxu0
    %v2632 = vadd.f32 %v2539, %v2631
    %v2633 = vpop.f32.mrf.mxu0
    %v2634 = vpop.f32.mrf.mxu0
    %v2635 = vadd.f32 %v2539, %v2634
    %v2636 = vpop.f32.mrf.mxu0
    %2637 = vmatprep.mubr.bf16.mxu0 0
    %2638 = vmatmul.mubr.bf16.gmra.mxu0 %v2517
    %v2639 = vpop.f32.mrf.mxu0
    %v2640 = vadd.f32 %v2539, %v2639
    %v2641 = vpop.f32.mrf.mxu0
    %v2642 = vpop.f32.mrf.mxu0
    %v2643 = vadd.f32 %v2539, %v2642
    %v2644 = vpop.f32.mrf.mxu0
    %2645 = vdwg.mxu0
    %2646 = vst [vmem:[%s15] sm:$0xff] %v2624
    %2647 = vst [vmem:[%s15 + $0x8] sm:$0xff] %v2627
    %2648 = vst [vmem:[%s15 + $0x10] sm:$0xff] %v2632
    %2649 = vst [vmem:[%s15 + $0x18] sm:$0xff] %v2635
    %2650 = vst [vmem:[%s15 + $0x20] sm:$0xff] %v2640
    %2651 = vst [vmem:[%s15 + $0x28] sm:$0xff] %v2643
    // Predicated region
    $region78: #{cnn_forward.1} parent=1 // pred_check
      _
    $region79: #{cnn_forward.1} parent=1 // pred_check_branch
      %2653 = sbr.rel (0) target = $region81
    $region80: #{cnn_forward.1} parent=1 // pred_region
      _
    $region81: #{cnn_forward.1} parent=1 // pred_fallthru
      _
    // Predicated region
    $region82: #{cnn_forward.1} parent=1 // pred_check
      _
    $region83: #{cnn_forward.1} parent=1 // pred_check_branch
      %2655 = sbr.rel (0) target = $region85
    $region84: #{cnn_forward.1} parent=1 // pred_region
      _
    $region85: #{cnn_forward.1} parent=1 // pred_fallthru
      _
    %2656 = vsyncpa [#allocation5], 1
    %2657 = vsyncpa [#allocation7], 1
    %2658 = vsyncpa [#allocation10], 1

</llo_original>
